<compile_context>
chip_gen: v5e
topology: v5e:2x2
jax: 0.10.0
libtpu: 0.0.40
codegen_flags: <defaults>
</compile_context>

<pallas_src>
import functools

import jax
import jax.numpy as jnp
from jax.experimental import pallas as pl
from jax.experimental.pallas import tpu as pltpu


def _resblock_kernel(x_ref, ident_ref, w1_ref, w2_ref, b1_ref, b2_ref,
                     mask_ref, o_ref, h_ref, *, offs, margin):
    """ResBlock forward for one block of Bblk images packed along lanes.

    x_ref:     (C, Lx)   bf16  zero-padded images, HW flattened onto lanes,
                               per-image stride P, 2*margin zero border.
    ident_ref: (C, N2)   f32   residual (same per-image packing, no margins).
    w1_ref:    (C, 9*C)  bf16  BN1-scale-folded conv1 weights (im2col layout).
    w2_ref:    (C, 9*C)  bf16  BN2-scale-folded conv2 weights.
    b1_ref:    (C, 1)    f32   folded BN1 bias.
    b2_ref:    (C, 1)    f32   folded BN2 bias.
    mask_ref:  (1, N1)   f32   1.0 on valid interior conv1 output positions.
    o_ref:     (C, N2)   f32   output (per-image stride P; border cut later).
    h_ref:     (C, N1)   bf16  VMEM scratch holding the conv1 activation.
    """
    N1 = h_ref.shape[1]
    N2 = o_ref.shape[1]
    M = margin

    def conv3x3(src_ref, w, out_len):
        # im2col: 9 lane-shifted windows stacked along the contraction axis,
        # then ONE MXU dot per conv (K = 9*Cin instead of Cin).
        patch = jnp.concatenate(
            [src_ref[:, pl.ds(M + off, out_len)] for off in offs], axis=0)
        return jax.lax.dot_general(
            w, patch, dimension_numbers=(((1,), (0,)), ((), ())),
            preferred_element_type=jnp.float32)          # (C, out_len) f32

    # conv1 (+ folded BN1 scale) -> bias + ReLU + interior mask -> bf16 scratch.
    acc1 = conv3x3(x_ref, w1_ref[...], N1)                              # (C, N1)
    h_ref[...] = (jnp.maximum(acc1 + b1_ref[...], 0.0)
                  * mask_ref[...]).astype(jnp.bfloat16)

    # conv2 (+ folded BN2 scale) -> bias + f32 residual + ReLU.
    acc2 = conv3x3(h_ref, w2_ref[...], N2)                              # (C, N2)
    o_ref[...] = jnp.maximum(acc2 + b2_ref[...] + ident_ref[...], 0.0)


def _round_up(v, m):
    return ((v + m - 1) // m) * m


def resblock_forward(x, w1, w2, gamma1, beta1, mean1, var1,
                     gamma2, beta2, mean2, var2, eps=1e-5, block_batch=None):
    """x: (B, C, H, W) f32 NCHW.  w1, w2: (Cout, Cin, 3, 3) OIHW (PyTorch)."""
    B, C, H, W = x.shape
    Hp, Wp = H + 2, W + 2
    HW = Hp * Wp
    mn = Wp + 1                              # max |flattened 3x3 tap offset|

    P = _round_up(HW, 128)                   # per-image lane stride (lane-dense)
    M = _round_up(mn, 128)                   # zero margin, 128-aligned
    Bblk = block_batch if block_batch is not None else min(B, 4)
    NB = -(-B // Bblk)                       # grid steps (batch blocks)
    Bp = NB * Bblk                           # padded batch

    N2 = Bblk * P                            # output / identity lanes per step
    N1 = N2 + 2 * M                          # conv1 activation lanes
    Lx = N1 + 2 * M                          # input slab lanes

    # Fold BatchNorm (inference) into per-out-channel scale / bias.
    s1 = gamma1 / jnp.sqrt(var1 + eps)
    b1 = beta1 - mean1 * s1
    s2 = gamma2 / jnp.sqrt(var2 + eps)
    b2 = beta2 - mean2 * s2

    # OIHW -> (Cout, ky, kx, Cin) -> (Cout, 9*Cin), BN scale folded, bf16 MXU.
    w1f = (w1 * s1[:, None, None, None]).transpose(0, 2, 3, 1).reshape(C, 9 * C)
    w2f = (w2 * s2[:, None, None, None]).transpose(0, 2, 3, 1).reshape(C, 9 * C)
    w1f = w1f.astype(jnp.bfloat16)
    w2f = w2f.astype(jnp.bfloat16)

    # Spatial zero-pad (padding=1), flatten HW onto lanes, pad each image to P
    # lanes, pack Bblk images per grid step along lanes, add 2M zero margins.
    xp = jnp.pad(x, ((0, Bp - B), (0, 0), (1, 1), (1, 1)))       # (Bp,C,Hp,Wp)
    xflat = jnp.pad(xp.reshape(Bp, C, HW), ((0, 0), (0, 0), (0, P - HW)))
    packed = (xflat.reshape(NB, Bblk, C, P)
              .transpose(0, 2, 1, 3).reshape(NB, C, N2))          # (NB,C,N2) f32
    xm = jnp.pad(packed, ((0, 0), (0, 0), (2 * M, 2 * M)))        # (NB,C,Lx)
    xm = xm.astype(jnp.bfloat16)                                  # bf16 DMA

    # Interior mask over the conv1 output range: zero on each image's padded
    # border, on the per-image lane padding, and on the margins.
    row_ok = (jnp.arange(Hp) >= 1) & (jnp.arange(Hp) <= H)
    col_ok = (jnp.arange(Wp) >= 1) & (jnp.arange(Wp) <= W)
    m_im = (row_ok[:, None] & col_ok[None, :]).astype(jnp.float32).reshape(HW)
    m_im = jnp.pad(m_im, (0, P - HW))                             # (P,)
    mask = jnp.pad(jnp.tile(m_im, Bblk), (M, M)).reshape(1, N1)   # (1, N1)

    # Tap order matches the weight reshape: t = (dy+1)*3 + (dx+1).
    offs = tuple(dy * Wp + dx for dy in (-1, 0, 1) for dx in (-1, 0, 1))
    kernel = functools.partial(_resblock_kernel, offs=offs, margin=M)

    out = pl.pallas_call(
        kernel,
        out_shape=jax.ShapeDtypeStruct((NB, C, N2), jnp.float32),
        grid_spec=pltpu.PrefetchScalarGridSpec(
            num_scalar_prefetch=0,
            grid=(NB,),
            in_specs=[
                pl.BlockSpec((None, C, Lx), lambda b: (b, 0, 0)),
                pl.BlockSpec((None, C, N2), lambda b: (b, 0, 0)),
                pl.BlockSpec((C, 9 * C), lambda b: (0, 0)),
                pl.BlockSpec((C, 9 * C), lambda b: (0, 0)),
                pl.BlockSpec((C, 1), lambda b: (0, 0)),
                pl.BlockSpec((C, 1), lambda b: (0, 0)),
                pl.BlockSpec((1, N1), lambda b: (0, 0)),
            ],
            out_specs=pl.BlockSpec((None, C, N2), lambda b: (b, 0, 0)),
            scratch_shapes=[pltpu.VMEM((C, N1), jnp.bfloat16)],
        ),
        compiler_params=pltpu.CompilerParams(
            dimension_semantics=("parallel",)),
    )(xm, packed, w1f, w2f, b1.reshape(C, 1), b2.reshape(C, 1), mask)

    # Unpack: drop the per-image lane pad and the spatial border (pure glue).
    out = out.reshape(NB, C, Bblk, P)[:, :, :, :HW]
    out = out.transpose(0, 2, 1, 3).reshape(Bp, C, Hp, Wp)
    return out[:B, :, 1:H + 1, 1:W + 1]


# ----------------------- pure-JAX reference (f32) ---------------------------
def _conv3x3_ref(x, w):
    return jax.lax.conv_general_dilated(
        x, w, window_strides=(1, 1), padding=((1, 1), (1, 1)),
        dimension_numbers=("NCHW", "OIHW", "NCHW"))


def resblock_ref(x, w1, w2, gamma1, beta1, mean1, var1,
                 gamma2, beta2, mean2, var2, eps=1e-5):
    s1 = gamma1 / jnp.sqrt(var1 + eps)
    b1 = beta1 - mean1 * s1
    s2 = gamma2 / jnp.sqrt(var2 + eps)
    b2 = beta2 - mean2 * s2
    out = jnp.maximum(_conv3x3_ref(x, w1) * s1[None, :, None, None]
                      + b1[None, :, None, None], 0.0)
    out = _conv3x3_ref(out, w2) * s2[None, :, None, None] + b2[None, :, None, None]
    return jnp.maximum(out + x, 0.0)


if __name__ == "__main__":
    # ResBlock(inplanes=4, planes=4, stride=1, downsample=None), NCHW input.
    B, C, H, W = 2, 4, 16, 16
    key = jax.random.PRNGKey(0)
    kx, kw1, kw2 = jax.random.split(key, 3)

    x = jax.random.normal(kx, (B, C, H, W), dtype=jnp.float32)
    w1 = 0.1 * jax.random.normal(kw1, (C, C, 3, 3), dtype=jnp.float32)   # OIHW
    w2 = 0.1 * jax.random.normal(kw2, (C, C, 3, 3), dtype=jnp.float32)   # OIHW

    # BatchNorm params (inference mode), deterministic non-trivial values.
    eps = 1e-5
    ar = jnp.arange(C, dtype=jnp.float32)
    gamma1, beta1 = 1.0 + 0.10 * ar, 0.05 * ar
    mean1, var1 = 0.01 * ar, 1.0 + 0.02 * ar
    gamma2, beta2 = 1.0 - 0.05 * ar, -0.03 * ar
    mean2, var2 = -0.02 * ar, 1.0 + 0.04 * ar

    out = resblock_forward(x, w1, w2, gamma1, beta1, mean1, var1,
                           gamma2, beta2, mean2, var2, eps=eps)
    out = jax.block_until_ready(out)

    ref = resblock_ref(x, w1, w2, gamma1, beta1, mean1, var1,
                       gamma2, beta2, mean2, var2, eps=eps)
    assert out.shape == (B, C, H, W)
    max_err = float(jnp.max(jnp.abs(out - ref)))
    # bf16 conv operands with f32 accumulation (residual stays f32).
    assert jnp.allclose(out, ref, rtol=3e-2, atol=3e-2), max_err

    print("KERNEL_OK")
</pallas_src>

<mosaic_0001>
module attributes {stable_mosaic.version = 11 : i64} {
  func.func @_resblock_kernel(%arg0: i32, %arg1: memref<1x4x1280xbf16, #tpu.memory_space<vmem>>, %arg2: memref<1x4x768xf32, #tpu.memory_space<vmem>>, %arg3: memref<4x36xbf16, #tpu.memory_space<vmem>>, %arg4: memref<4x36xbf16, #tpu.memory_space<vmem>>, %arg5: memref<4x1xf32, #tpu.memory_space<vmem>>, %arg6: memref<4x1xf32, #tpu.memory_space<vmem>>, %arg7: memref<1x1024xf32, #tpu.memory_space<vmem>>, %arg8: memref<1x4x768xf32, #tpu.memory_space<vmem>>, %arg9: memref<4x1024xbf16, #tpu.memory_space<vmem>>) attributes {dimension_semantics = [#tpu.dimension_semantics<parallel>], iteration_bounds = array<i64: 1>, scalar_prefetch = 0 : i64, scratch_operands = 1 : i64, tpu.core_type = #tpu.core_type<tc>, window_params = [{transform_indices = @transform_0, window_bounds = array<i64: 1, 4, 1280>}, {transform_indices = @transform_1, window_bounds = array<i64: 1, 4, 768>}, {pipeline_mode = #tpu.pipeline_mode<synchronous>, transform_indices = @transform_2, window_bounds = array<i64: 4, 36>}, {pipeline_mode = #tpu.pipeline_mode<synchronous>, transform_indices = @transform_3, window_bounds = array<i64: 4, 36>}, {pipeline_mode = #tpu.pipeline_mode<synchronous>, transform_indices = @transform_4, window_bounds = array<i64: 4, 1>}, {pipeline_mode = #tpu.pipeline_mode<synchronous>, transform_indices = @transform_5, window_bounds = array<i64: 4, 1>}, {pipeline_mode = #tpu.pipeline_mode<synchronous>, transform_indices = @transform_6, window_bounds = array<i64: 1, 1024>}, {transform_indices = @transform_7, window_bounds = array<i64: 1, 4, 768>}]} {
    %c0 = arith.constant 0 : index
    %c0_0 = arith.constant 0 : index
    %0 = vector.load %arg3[%c0, %c0_0] : memref<4x36xbf16, #tpu.memory_space<vmem>>, vector<4x36xbf16>
    %c0_1 = arith.constant 0 : index
    %c0_2 = arith.constant 0 : index
    %c109 = arith.constant 109 : index
    %1 = vector.load %arg1[%c0_1, %c0_2, %c109] : memref<1x4x1280xbf16, #tpu.memory_space<vmem>>, vector<1x4x1024xbf16>
    %2 = vector.shape_cast %1 : vector<1x4x1024xbf16> to vector<4x1024xbf16>
    %c0_3 = arith.constant 0 : index
    %c0_4 = arith.constant 0 : index
    %c110 = arith.constant 110 : index
    %3 = vector.load %arg1[%c0_3, %c0_4, %c110] : memref<1x4x1280xbf16, #tpu.memory_space<vmem>>, vector<1x4x1024xbf16>
    %4 = vector.shape_cast %3 : vector<1x4x1024xbf16> to vector<4x1024xbf16>
    %c0_5 = arith.constant 0 : index
    %c0_6 = arith.constant 0 : index
    %c111 = arith.constant 111 : index
    %5 = vector.load %arg1[%c0_5, %c0_6, %c111] : memref<1x4x1280xbf16, #tpu.memory_space<vmem>>, vector<1x4x1024xbf16>
    %6 = vector.shape_cast %5 : vector<1x4x1024xbf16> to vector<4x1024xbf16>
    %c0_7 = arith.constant 0 : index
    %c0_8 = arith.constant 0 : index
    %c127 = arith.constant 127 : index
    %7 = vector.load %arg1[%c0_7, %c0_8, %c127] : memref<1x4x1280xbf16, #tpu.memory_space<vmem>>, vector<1x4x1024xbf16>
    %8 = vector.shape_cast %7 : vector<1x4x1024xbf16> to vector<4x1024xbf16>
    %c0_9 = arith.constant 0 : index
    %c0_10 = arith.constant 0 : index
    %c128 = arith.constant 128 : index
    %9 = vector.load %arg1[%c0_9, %c0_10, %c128] : memref<1x4x1280xbf16, #tpu.memory_space<vmem>>, vector<1x4x1024xbf16>
    %10 = vector.shape_cast %9 : vector<1x4x1024xbf16> to vector<4x1024xbf16>
    %c0_11 = arith.constant 0 : index
    %c0_12 = arith.constant 0 : index
    %c129 = arith.constant 129 : index
    %11 = vector.load %arg1[%c0_11, %c0_12, %c129] : memref<1x4x1280xbf16, #tpu.memory_space<vmem>>, vector<1x4x1024xbf16>
    %12 = vector.shape_cast %11 : vector<1x4x1024xbf16> to vector<4x1024xbf16>
    %c0_13 = arith.constant 0 : index
    %c0_14 = arith.constant 0 : index
    %c145 = arith.constant 145 : index
    %13 = vector.load %arg1[%c0_13, %c0_14, %c145] : memref<1x4x1280xbf16, #tpu.memory_space<vmem>>, vector<1x4x1024xbf16>
    %14 = vector.shape_cast %13 : vector<1x4x1024xbf16> to vector<4x1024xbf16>
    %c0_15 = arith.constant 0 : index
    %c0_16 = arith.constant 0 : index
    %c146 = arith.constant 146 : index
    %15 = vector.load %arg1[%c0_15, %c0_16, %c146] : memref<1x4x1280xbf16, #tpu.memory_space<vmem>>, vector<1x4x1024xbf16>
    %16 = vector.shape_cast %15 : vector<1x4x1024xbf16> to vector<4x1024xbf16>
    %c0_17 = arith.constant 0 : index
    %c0_18 = arith.constant 0 : index
    %c147 = arith.constant 147 : index
    %17 = vector.load %arg1[%c0_17, %c0_18, %c147] : memref<1x4x1280xbf16, #tpu.memory_space<vmem>>, vector<1x4x1024xbf16>
    %18 = vector.shape_cast %17 : vector<1x4x1024xbf16> to vector<4x1024xbf16>
    %19 = tpu.concatenate %2, %4, %6, %8, %10, %12, %14, %16, %18 in 0 : vector<4x1024xbf16>, vector<4x1024xbf16>, vector<4x1024xbf16>, vector<4x1024xbf16>, vector<4x1024xbf16>, vector<4x1024xbf16>, vector<4x1024xbf16>, vector<4x1024xbf16>, vector<4x1024xbf16> -> vector<36x1024xbf16>
    %cst = arith.constant dense<0.000000e+00> : vector<4x1024xf32>
    %20 = tpu.matmul %0, %19, %cst {dimension_numbers = #tpu.dot_dimension_numbers<[1], [0], [0], [1], [0, 0, 1, 1], [], []>} : vector<4x36xbf16>, vector<36x1024xbf16>, vector<4x1024xf32> -> vector<4x1024xf32>
    %c0_19 = arith.constant 0 : index
    %c0_20 = arith.constant 0 : index
    %21 = vector.load %arg5[%c0_19, %c0_20] : memref<4x1xf32, #tpu.memory_space<vmem>>, vector<4x1xf32>
    %22 = vector.broadcast %21 : vector<4x1xf32> to vector<4x1024xf32>
    %23 = arith.addf %20, %22 : vector<4x1024xf32>
    %cst_21 = arith.constant 0.000000e+00 : f32
    %24 = vector.broadcast %cst_21 : f32 to vector<4x1024xf32>
    %25 = arith.maximumf %23, %24 : vector<4x1024xf32>
    %c0_22 = arith.constant 0 : index
    %c0_23 = arith.constant 0 : index
    %26 = vector.load %arg7[%c0_22, %c0_23] : memref<1x1024xf32, #tpu.memory_space<vmem>>, vector<1x1024xf32>
    %27 = vector.broadcast %26 : vector<1x1024xf32> to vector<4x1024xf32>
    %28 = arith.mulf %25, %27 : vector<4x1024xf32>
    %29 = arith.truncf %28 : vector<4x1024xf32> to vector<4x1024xbf16>
    %c0_24 = arith.constant 0 : index
    %c0_25 = arith.constant 0 : index
    %30 = vector.load %arg9[%c0_24, %c0_25] : memref<4x1024xbf16, #tpu.memory_space<vmem>>, vector<4x1024xbf16>
    tpu.vector_store %arg9[%c0_24, %c0_25], %29 {strides = array<i32>} : memref<4x1024xbf16, #tpu.memory_space<vmem>>, vector<4x1024xbf16>,
    %c0_26 = arith.constant 0 : index
    %c0_27 = arith.constant 0 : index
    %31 = vector.load %arg4[%c0_26, %c0_27] : memref<4x36xbf16, #tpu.memory_space<vmem>>, vector<4x36xbf16>
    %c0_28 = arith.constant 0 : index
    %c109_29 = arith.constant 109 : index
    %32 = vector.load %arg9[%c0_28, %c109_29] : memref<4x1024xbf16, #tpu.memory_space<vmem>>, vector<4x768xbf16>
    %c0_30 = arith.constant 0 : index
    %c110_31 = arith.constant 110 : index
    %33 = vector.load %arg9[%c0_30, %c110_31] : memref<4x1024xbf16, #tpu.memory_space<vmem>>, vector<4x768xbf16>
    %c0_32 = arith.constant 0 : index
    %c111_33 = arith.constant 111 : index
    %34 = vector.load %arg9[%c0_32, %c111_33] : memref<4x1024xbf16, #tpu.memory_space<vmem>>, vector<4x768xbf16>
    %c0_34 = arith.constant 0 : index
    %c127_35 = arith.constant 127 : index
    %35 = vector.load %arg9[%c0_34, %c127_35] : memref<4x1024xbf16, #tpu.memory_space<vmem>>, vector<4x768xbf16>
    %c0_36 = arith.constant 0 : index
    %c128_37 = arith.constant 128 : index
    %36 = vector.load %arg9[%c0_36, %c128_37] : memref<4x1024xbf16, #tpu.memory_space<vmem>>, vector<4x768xbf16>
    %c0_38 = arith.constant 0 : index
    %c129_39 = arith.constant 129 : index
    %37 = vector.load %arg9[%c0_38, %c129_39] : memref<4x1024xbf16, #tpu.memory_space<vmem>>, vector<4x768xbf16>
    %c0_40 = arith.constant 0 : index
    %c145_41 = arith.constant 145 : index
    %38 = vector.load %arg9[%c0_40, %c145_41] : memref<4x1024xbf16, #tpu.memory_space<vmem>>, vector<4x768xbf16>
    %c0_42 = arith.constant 0 : index
    %c146_43 = arith.constant 146 : index
    %39 = vector.load %arg9[%c0_42, %c146_43] : memref<4x1024xbf16, #tpu.memory_space<vmem>>, vector<4x768xbf16>
    %c0_44 = arith.constant 0 : index
    %c147_45 = arith.constant 147 : index
    %40 = vector.load %arg9[%c0_44, %c147_45] : memref<4x1024xbf16, #tpu.memory_space<vmem>>, vector<4x768xbf16>
    %41 = tpu.concatenate %32, %33, %34, %35, %36, %37, %38, %39, %40 in 0 : vector<4x768xbf16>, vector<4x768xbf16>, vector<4x768xbf16>, vector<4x768xbf16>, vector<4x768xbf16>, vector<4x768xbf16>, vector<4x768xbf16>, vector<4x768xbf16>, vector<4x768xbf16> -> vector<36x768xbf16>
    %cst_46 = arith.constant dense<0.000000e+00> : vector<4x768xf32>
    %42 = tpu.matmul %31, %41, %cst_46 {dimension_numbers = #tpu.dot_dimension_numbers<[1], [0], [0], [1], [0, 0, 1, 1], [], []>} : vector<4x36xbf16>, vector<36x768xbf16>, vector<4x768xf32> -> vector<4x768xf32>
    %c0_47 = arith.constant 0 : index
    %c0_48 = arith.constant 0 : index
    %43 = vector.load %arg6[%c0_47, %c0_48] : memref<4x1xf32, #tpu.memory_space<vmem>>, vector<4x1xf32>
    %44 = vector.broadcast %43 : vector<4x1xf32> to vector<4x768xf32>
    %45 = arith.addf %42, %44 : vector<4x768xf32>
    %c0_49 = arith.constant 0 : index
    %c0_50 = arith.constant 0 : index
    %c0_51 = arith.constant 0 : index
    %46 = vector.load %arg2[%c0_49, %c0_50, %c0_51] : memref<1x4x768xf32, #tpu.memory_space<vmem>>, vector<1x4x768xf32>
    %47 = vector.shape_cast %46 : vector<1x4x768xf32> to vector<4x768xf32>
    %48 = arith.addf %45, %47 : vector<4x768xf32>
    %cst_52 = arith.constant 0.000000e+00 : f32
    %49 = vector.broadcast %cst_52 : f32 to vector<4x768xf32>
    %50 = arith.maximumf %48, %49 : vector<4x768xf32>
    %c0_53 = arith.constant 0 : index
    %c0_54 = arith.constant 0 : index
    %c0_55 = arith.constant 0 : index
    %51 = vector.load %arg8[%c0_53, %c0_54, %c0_55] : memref<1x4x768xf32, #tpu.memory_space<vmem>>, vector<1x4x768xf32>
    %52 = vector.shape_cast %51 : vector<1x4x768xf32> to vector<4x768xf32>
    %53 = vector.shape_cast %50 : vector<4x768xf32> to vector<1x4x768xf32>
    tpu.vector_store %arg8[%c0_53, %c0_54, %c0_55], %53 {strides = array<i32>} : memref<1x4x768xf32, #tpu.memory_space<vmem>>, vector<1x4x768xf32>,
    return
  }
  func.func @transform_0(%arg0: i32) -> (i32, i32, i32) {
    %c0_i32 = arith.constant 0 : i32
    %c0_i32_0 = arith.constant 0 : i32
    %c0_i32_1 = arith.constant 0 : i32
    return %arg0, %c0_i32, %c0_i32_0 : i32, i32, i32
  }
  func.func @transform_1(%arg0: i32) -> (i32, i32, i32) {
    %c0_i32 = arith.constant 0 : i32
    %c0_i32_0 = arith.constant 0 : i32
    %c0_i32_1 = arith.constant 0 : i32
    return %arg0, %c0_i32, %c0_i32_0 : i32, i32, i32
  }
  func.func @transform_2(%arg0: i32) -> (i32, i32) {
    %c0_i32 = arith.constant 0 : i32
    %c0_i32_0 = arith.constant 0 : i32
    %c0_i32_1 = arith.constant 0 : i32
    return %c0_i32, %c0_i32_0 : i32, i32
  }
  func.func @transform_3(%arg0: i32) -> (i32, i32) {
    %c0_i32 = arith.constant 0 : i32
    %c0_i32_0 = arith.constant 0 : i32
    %c0_i32_1 = arith.constant 0 : i32
    return %c0_i32, %c0_i32_0 : i32, i32
  }
  func.func @transform_4(%arg0: i32) -> (i32, i32) {
    %c0_i32 = arith.constant 0 : i32
    %c0_i32_0 = arith.constant 0 : i32
    %c0_i32_1 = arith.constant 0 : i32
    return %c0_i32, %c0_i32_0 : i32, i32
  }
  func.func @transform_5(%arg0: i32) -> (i32, i32) {
    %c0_i32 = arith.constant 0 : i32
    %c0_i32_0 = arith.constant 0 : i32
    %c0_i32_1 = arith.constant 0 : i32
    return %c0_i32, %c0_i32_0 : i32, i32
  }
  func.func @transform_6(%arg0: i32) -> (i32, i32) {
    %c0_i32 = arith.constant 0 : i32
    %c0_i32_0 = arith.constant 0 : i32
    %c0_i32_1 = arith.constant 0 : i32
    return %c0_i32, %c0_i32_0 : i32, i32
  }
  func.func @transform_7(%arg0: i32) -> (i32, i32, i32) {
    %c0_i32 = arith.constant 0 : i32
    %c0_i32_0 = arith.constant 0 : i32
    %c0_i32_1 = arith.constant 0 : i32
    return %arg0, %c0_i32, %c0_i32_0 : i32, i32, i32
  }
}

</mosaic_0001>

<llo_original>
// kernel: tpu_custom_call.1
$region0: #{tpu_custom_call.1}
  #allocation0 [shape = 'u32[]', space=smem, size = 0x4, offset = 0x4, fixed_abs, tag = 'smem constant byte address 0x4 - core index']
  #allocation1 [shape = 'u32[72,128]{1,0:T(1,128)}', space=vmem, size = 0x9000, scoped, tag = 'internal scratch']
  #allocation2 [shape = 'bf16[4,1024]{1,0:T(4,128)(2,1)}', space=vmem, size = 0x2000, scoped, tag = 'scratch operand']
  %s0 = inlined_call_operand.hbm [shape: bf16[1,4,1280], index: 0, kind: input, shape index: {}]
  %s1 = inlined_call_operand.hbm [shape: f32[1,4,768], index: 1, kind: input, shape index: {}]
  %s2 = inlined_call_operand.hbm [shape: bf16[4,36], index: 2, kind: input, shape index: {}]
  %s3 = inlined_call_operand.hbm [shape: bf16[4,36], index: 3, kind: input, shape index: {}]
  %s4 = inlined_call_operand.vmem [shape: f32[4,1], index: 4, kind: input, shape index: {}]
  %s5 = inlined_call_operand.vmem [shape: f32[4,1], index: 5, kind: input, shape index: {}]
  %s6 = inlined_call_operand.vmem [shape: f32[1,1024], index: 6, kind: input, shape index: {}]
  %s7 = inlined_call_operand.hbm [shape: f32[1,4,768], index: 7, kind: output, shape index: {}]
  %s8 = sld [smem:[#allocation0]]
  $region54: #{tpu_custom_call.1} parent=0
    _
  %s10 = ssub.s32 1, %s8
  %s11 = scalar_select 0, %s10, %s8
  $region1: #{tpu_custom_call.1} parent=0
    #allocation3 [shape = 'u8[10240]{0}', space=vmem, size = 0x2800, scoped, tag = 'input window, operand 0, single buffered']
    #allocation4 [shape = 's32[1]{0}', space=sflag, size = 0x4, scoped, tag = 'scoped memory for tpu_custom_call.1']
    #allocation5 [shape = 's32[1]{0}', space=sflag, size = 0x4, scoped, tag = 'scoped memory for tpu_custom_call.1']
    #allocation6 [shape = 'u8[12288]{0}', space=vmem, size = 0x3000, scoped, tag = 'input window, operand 1, single buffered']
    #allocation7 [shape = 's32[1]{0}', space=sflag, size = 0x4, scoped, tag = 'scoped memory for tpu_custom_call.1']
    #allocation8 [shape = 'u8[1024]{0}', space=vmem, size = 0x400, scoped, tag = 'input window, operand 2, single buffered']
    #allocation9 [shape = 'u8[1024]{0}', space=vmem, size = 0x400, scoped, tag = 'input window, operand 3, single buffered']
    #allocation10 [shape = 's32[1]{0}', space=sflag, size = 0x4, scoped, tag = 'scoped memory for tpu_custom_call.1']
    #allocation11 [shape = 'u8[12288]{0}', space=vmem, size = 0x3000, scoped, tag = 'output window, operand 0, single buffered']
    %12 = vsyncpa [#allocation4], 0
    %13 = vsyncpa [#allocation7], 0
    %14 = vsyncpa [#allocation10], 0
    %15 = vsyncpa [#allocation5], 0
    // Predicated region
    $region2: #{tpu_custom_call.1} parent=1 // pred_check
      _
    $region3: #{tpu_custom_call.1} parent=1 // pred_check_branch
      %17 = sbr.rel (0) target = $region5
    $region4: #{tpu_custom_call.1} parent=1 // pred_region
      %19 = vsyncadd [#allocation4], 0
      %s21 = sshll.u32 %s0, 4
      %s22 = int_to_ptr.hbm [resolvable:$true] %s21
      %s23 = sshll.u32 [#allocation3], 4
      %s24 = int_to_ptr.vmem [resolvable:$true] %s23
      %26 = dma.hbm_to_vmem [thread:$0]  %s22, 320, %s24, [#allocation4]
    $region5: #{tpu_custom_call.1} parent=1 // pred_fallthru
      _
    // Predicated region
    $region6: #{tpu_custom_call.1} parent=1 // pred_check
      _
    $region7: #{tpu_custom_call.1} parent=1 // pred_check_branch
      %28 = sbr.rel (0) target = $region9
    $region8: #{tpu_custom_call.1} parent=1 // pred_region
      %30 = vsyncadd [#allocation7], 0
      %s32 = sshll.u32 %s1, 4
      %s33 = int_to_ptr.hbm [resolvable:$true] %s32
      %s34 = sshll.u32 [#allocation6], 4
      %s35 = int_to_ptr.vmem [resolvable:$true] %s34
      %37 = dma.hbm_to_vmem [thread:$0]  %s33, 384, %s35, [#allocation7]
    $region9: #{tpu_custom_call.1} parent=1 // pred_fallthru
      _
    // Predicated region
    $region10: #{tpu_custom_call.1} parent=1 // pred_check
      _
    $region11: #{tpu_custom_call.1} parent=1 // pred_check_branch
      %39 = sbr.rel (0) target = $region13
    $region12: #{tpu_custom_call.1} parent=1 // pred_region
      %41 = vsyncadd [#allocation7], 0
      %s43 = sshll.u32 %s2, 4
      %s44 = int_to_ptr.hbm [resolvable:$true] %s43
      %s45 = sshll.u32 [#allocation8], 4
      %s46 = int_to_ptr.vmem [resolvable:$true] %s45
      %48 = dma.hbm_to_vmem [thread:$0]  %s44, 32, %s46, [#allocation7]
    $region13: #{tpu_custom_call.1} parent=1 // pred_fallthru
      _
    // Predicated region
    $region14: #{tpu_custom_call.1} parent=1 // pred_check
      _
    $region15: #{tpu_custom_call.1} parent=1 // pred_check_branch
      %50 = sbr.rel (0) target = $region17
    $region16: #{tpu_custom_call.1} parent=1 // pred_region
      %52 = vsyncadd [#allocation10], 0
      %s54 = sshll.u32 %s3, 4
      %s55 = int_to_ptr.hbm [resolvable:$true] %s54
      %s56 = sshll.u32 [#allocation9], 4
      %s57 = int_to_ptr.vmem [resolvable:$true] %s56
      %59 = dma.hbm_to_vmem [thread:$0]  %s55, 32, %s57, [#allocation10]
    $region17: #{tpu_custom_call.1} parent=1 // pred_fallthru
      _
    // Predicated region
    $region18: #{tpu_custom_call.1} parent=1 // pred_check
      _
    $region19: #{tpu_custom_call.1} parent=1 // pred_check_branch
      %61 = sbr.rel (0) target = $region21
    $region20: #{tpu_custom_call.1} parent=1 // pred_region
      _
    $region21: #{tpu_custom_call.1} parent=1 // pred_fallthru
      _
    // Predicated region
    $region22: #{tpu_custom_call.1} parent=1 // pred_check
      _
    $region23: #{tpu_custom_call.1} parent=1 // pred_check_branch
      %63 = sbr.rel (0) target = $region25
    $region24: #{tpu_custom_call.1} parent=1 // pred_region
      _
    $region25: #{tpu_custom_call.1} parent=1 // pred_fallthru
      _
    // Predicated region
    $region26: #{tpu_custom_call.1} parent=1 // pred_check
      _
    $region27: #{tpu_custom_call.1} parent=1 // pred_check_branch
      %65 = sbr.rel (0) target = $region29
    $region28: #{tpu_custom_call.1} parent=1 // pred_region
      _
    $region29: #{tpu_custom_call.1} parent=1 // pred_fallthru
      _
    // Predicated region
    $region30: #{tpu_custom_call.1} parent=1 // pred_check
      _
    $region31: #{tpu_custom_call.1} parent=1 // pred_check_branch
      %67 = sbr.rel (0) target = $region33
    $region32: #{tpu_custom_call.1} parent=1 // pred_region
      %69 = dma.done [#allocation4], 320
    $region33: #{tpu_custom_call.1} parent=1 // pred_fallthru
      _
    // Predicated region
    $region34: #{tpu_custom_call.1} parent=1 // pred_check
      _
    $region35: #{tpu_custom_call.1} parent=1 // pred_check_branch
      %71 = sbr.rel (0) target = $region37
    $region36: #{tpu_custom_call.1} parent=1 // pred_region
      %73 = dma.done [#allocation7], 384
    $region37: #{tpu_custom_call.1} parent=1 // pred_fallthru
      _
    // Predicated region
    $region38: #{tpu_custom_call.1} parent=1 // pred_check
      _
    $region39: #{tpu_custom_call.1} parent=1 // pred_check_branch
      %75 = sbr.rel (0) target = $region41
    $region40: #{tpu_custom_call.1} parent=1 // pred_region
      %77 = dma.done [#allocation7], 32
    $region41: #{tpu_custom_call.1} parent=1 // pred_fallthru
      _
    // Predicated region
    $region42: #{tpu_custom_call.1} parent=1 // pred_check
      _
    $region43: #{tpu_custom_call.1} parent=1 // pred_check_branch
      %79 = sbr.rel (0) target = $region45
    $region44: #{tpu_custom_call.1} parent=1 // pred_region
      %81 = dma.done [#allocation10], 32
    $region45: #{tpu_custom_call.1} parent=1 // pred_fallthru
      _
    %v83 = vld [vmem:[#allocation8] sm:$0x3]
    %v84 = vld [vmem:[#allocation3] sm:$0xff]
    %v85 = vld [vmem:[#allocation3 + $0x8] sm:$0xff]
    %v86 = vld [vmem:[#allocation3 + $0x10] sm:$0x3]
    %v87 = vld [vmem:[#allocation3 + $0x2] sm:$0xff]
    %v88 = vld [vmem:[#allocation3 + $0xa] sm:$0xff]
    %v89 = vld [vmem:[#allocation3 + $0x2] sm:$0xff]
    %v90 = vld [vmem:[#allocation3 + $0xa] sm:$0xff]
    %v91 = vld [vmem:[#allocation3 + $0x12] sm:$0x3]
    %93 = vst [vmem:[#allocation1] ss:$4 sm:$0xff] %v84
    %s95 = scalar_lea.vmem [#allocation1], 32
    %96 = vst [vmem:[%s95] ss:$4 sm:$0xff] %v85
    %v97 = vld.sshfl [vmem:[#allocation1] sm:$0xff pattern:$0x73625140]
    %v98 = vld.sshfl [vmem:[#allocation1 + $0x8] sm:$0xff pattern:$0x73625140]
    %v99 = vld.sshfl [vmem:[#allocation1 + $0x10] sm:$0xff pattern:$0x73625140]
    %v100 = vld.sshfl [vmem:[#allocation1 + $0x18] sm:$0xff pattern:$0x73625140]
    %v101 = vld.sshfl [vmem:[#allocation1 + $0x20] sm:$0xff pattern:$0x73625140]
    %v102 = vld.sshfl [vmem:[#allocation1 + $0x28] sm:$0xff pattern:$0x73625140]
    %v103 = vld.sshfl [vmem:[#allocation1 + $0x30] sm:$0xff pattern:$0x73625140]
    %v104 = vld.sshfl [vmem:[#allocation1 + $0x38] sm:$0xff pattern:$0x73625140]
    %106 = vst [vmem:[#allocation1] ss:$4 sm:$0xff] %v86
    %v107 = vld.sshfl [vmem:[#allocation1] sm:$0xff pattern:$0x73625140]
    %s108 = scalar_lea.vmem [#allocation1], 1
    %109 = vst [vmem:[%s108] ss:$4 sm:$0xff] %v84
    %s110 = scalar_lea.vmem [#allocation1], 33
    %111 = vst [vmem:[%s110] ss:$4 sm:$0xff] %v85
    %v112 = vld.sshfl [vmem:[#allocation1] sm:$0xff pattern:$0x73625140]
    %v114 = vld.sshfl [vmem:[#allocation1 + $0x8] sm:$0xff pattern:$0x73625140]
    %v116 = vld.sshfl [vmem:[#allocation1 + $0x10] sm:$0xff pattern:$0x73625140]
    %v118 = vld.sshfl [vmem:[#allocation1 + $0x18] sm:$0xff pattern:$0x73625140]
    %v120 = vld.sshfl [vmem:[#allocation1 + $0x20] sm:$0xff pattern:$0x73625140]
    %v122 = vld.sshfl [vmem:[#allocation1 + $0x28] sm:$0xff pattern:$0x73625140]
    %v124 = vld.sshfl [vmem:[#allocation1 + $0x30] sm:$0xff pattern:$0x73625140]
    %v126 = vld.sshfl [vmem:[#allocation1 + $0x38] sm:$0xff pattern:$0x73625140]
    %128 = vst [vmem:[%s108] ss:$4 sm:$0xff] %v86
    %v129 = vld.sshfl [vmem:[#allocation1] sm:$0xff pattern:$0x73625140]
    %131 = vrot.lane.b32.xlu0 %v112, 127
    %v132 = vpop.permute.xlu0 %131
    %133 = vrot.lane.b32.xlu0 %v114, 127
    %v134 = vpop.permute.xlu0 %133
    %135 = vrot.lane.b32.xlu0 %v116, 127
    %v136 = vpop.permute.xlu0 %135
    %137 = vrot.lane.b32.xlu0 %v118, 127
    %v138 = vpop.permute.xlu0 %137
    %139 = vrot.lane.b32.xlu0 %v120, 127
    %v140 = vpop.permute.xlu0 %139
    %141 = vrot.lane.b32.xlu0 %v122, 127
    %v142 = vpop.permute.xlu0 %141
    %143 = vrot.lane.b32.xlu0 %v124, 127
    %v144 = vpop.permute.xlu0 %143
    %145 = vrot.lane.b32.xlu0 %v126, 127
    %v146 = vpop.permute.xlu0 %145
    %147 = vrot.lane.b32.xlu0 %v129, 127
    %v148 = vpop.permute.xlu0 %147
    %vm149 = vcmask 1039360
    %v150 = vsel %vm149, %v132, %v134
    %v151 = vsel %vm149, %v134, %v136
    %v152 = vsel %vm149, %v136, %v138
    %v153 = vsel %vm149, %v138, %v140
    %v154 = vsel %vm149, %v140, %v142
    %v155 = vsel %vm149, %v142, %v144
    %v156 = vsel %vm149, %v144, %v146
    %v157 = vsel %vm149, %v146, %v148
    %s158 = scalar_lea.vmem [#allocation1], 2
    %159 = vst [vmem:[%s158] ss:$4 sm:$0xff] %v84
    %s160 = scalar_lea.vmem [#allocation1], 34
    %161 = vst [vmem:[%s160] ss:$4 sm:$0xff] %v85
    %v162 = vld.sshfl [vmem:[#allocation1] sm:$0xff pattern:$0x73625140]
    %v164 = vld.sshfl [vmem:[#allocation1 + $0x8] sm:$0xff pattern:$0x73625140]
    %v166 = vld.sshfl [vmem:[#allocation1 + $0x10] sm:$0xff pattern:$0x73625140]
    %v168 = vld.sshfl [vmem:[#allocation1 + $0x18] sm:$0xff pattern:$0x73625140]
    %v170 = vld.sshfl [vmem:[#allocation1 + $0x20] sm:$0xff pattern:$0x73625140]
    %v172 = vld.sshfl [vmem:[#allocation1 + $0x28] sm:$0xff pattern:$0x73625140]
    %v174 = vld.sshfl [vmem:[#allocation1 + $0x30] sm:$0xff pattern:$0x73625140]
    %v176 = vld.sshfl [vmem:[#allocation1 + $0x38] sm:$0xff pattern:$0x73625140]
    %178 = vst [vmem:[%s158] ss:$4 sm:$0xff] %v86
    %v179 = vld.sshfl [vmem:[#allocation1] sm:$0xff pattern:$0x73625140]
    %181 = vrot.lane.b32.xlu0 %v162, 126
    %v182 = vpop.permute.xlu0 %181
    %183 = vrot.lane.b32.xlu0 %v164, 126
    %v184 = vpop.permute.xlu0 %183
    %185 = vrot.lane.b32.xlu0 %v166, 126
    %v186 = vpop.permute.xlu0 %185
    %187 = vrot.lane.b32.xlu0 %v168, 126
    %v188 = vpop.permute.xlu0 %187
    %189 = vrot.lane.b32.xlu0 %v170, 126
    %v190 = vpop.permute.xlu0 %189
    %191 = vrot.lane.b32.xlu0 %v172, 126
    %v192 = vpop.permute.xlu0 %191
    %193 = vrot.lane.b32.xlu0 %v174, 126
    %v194 = vpop.permute.xlu0 %193
    %195 = vrot.lane.b32.xlu0 %v176, 126
    %v196 = vpop.permute.xlu0 %195
    %197 = vrot.lane.b32.xlu0 %v179, 126
    %v198 = vpop.permute.xlu0 %197
    %vm199 = vcmask 1031168
    %v200 = vsel %vm199, %v182, %v184
    %v201 = vsel %vm199, %v184, %v186
    %v202 = vsel %vm199, %v186, %v188
    %v203 = vsel %vm199, %v188, %v190
    %v204 = vsel %vm199, %v190, %v192
    %v205 = vsel %vm199, %v192, %v194
    %v206 = vsel %vm199, %v194, %v196
    %v207 = vsel %vm199, %v196, %v198
    %s208 = scalar_lea.vmem [#allocation1], 3
    %209 = vst [vmem:[%s208] ss:$4 sm:$0xff] %v84
    %s210 = scalar_lea.vmem [#allocation1], 35
    %211 = vst [vmem:[%s210] ss:$4 sm:$0xff] %v85
    %v212 = vld.sshfl [vmem:[#allocation1] sm:$0xff pattern:$0x73625140]
    %v214 = vld.sshfl [vmem:[#allocation1 + $0x8] sm:$0xff pattern:$0x73625140]
    %v216 = vld.sshfl [vmem:[#allocation1 + $0x10] sm:$0xff pattern:$0x73625140]
    %v218 = vld.sshfl [vmem:[#allocation1 + $0x18] sm:$0xff pattern:$0x73625140]
    %v220 = vld.sshfl [vmem:[#allocation1 + $0x20] sm:$0xff pattern:$0x73625140]
    %v222 = vld.sshfl [vmem:[#allocation1 + $0x28] sm:$0xff pattern:$0x73625140]
    %v224 = vld.sshfl [vmem:[#allocation1 + $0x30] sm:$0xff pattern:$0x73625140]
    %v226 = vld.sshfl [vmem:[#allocation1 + $0x38] sm:$0xff pattern:$0x73625140]
    %228 = vst [vmem:[%s208] ss:$4 sm:$0xff] %v86
    %v229 = vld.sshfl [vmem:[#allocation1] sm:$0xff pattern:$0x73625140]
    %231 = vrot.lane.b32.xlu0 %v212, 110
    %v232 = vpop.permute.xlu0 %231
    %233 = vrot.lane.b32.xlu0 %v214, 110
    %v234 = vpop.permute.xlu0 %233
    %235 = vrot.lane.b32.xlu0 %v216, 110
    %v236 = vpop.permute.xlu0 %235
    %237 = vrot.lane.b32.xlu0 %v218, 110
    %v238 = vpop.permute.xlu0 %237
    %239 = vrot.lane.b32.xlu0 %v220, 110
    %v240 = vpop.permute.xlu0 %239
    %241 = vrot.lane.b32.xlu0 %v222, 110
    %v242 = vpop.permute.xlu0 %241
    %243 = vrot.lane.b32.xlu0 %v224, 110
    %v244 = vpop.permute.xlu0 %243
    %245 = vrot.lane.b32.xlu0 %v226, 110
    %v246 = vpop.permute.xlu0 %245
    %247 = vrot.lane.b32.xlu0 %v229, 110
    %v248 = vpop.permute.xlu0 %247
    %vm249 = vcmask 900096
    %v250 = vsel %vm249, %v232, %v234
    %v251 = vsel %vm249, %v234, %v236
    %v252 = vsel %vm249, %v236, %v238
    %v253 = vsel %vm249, %v238, %v240
    %v254 = vsel %vm249, %v240, %v242
    %v255 = vsel %vm249, %v242, %v244
    %v256 = vsel %vm249, %v244, %v246
    %v257 = vsel %vm249, %v246, %v248
    %259 = vst [vmem:[#allocation1] ss:$4 sm:$0xff] %v87
    %s261 = scalar_lea.vmem [#allocation1], 32
    %262 = vst [vmem:[%s261] ss:$4 sm:$0xff] %v88
    %v263 = vld.sshfl [vmem:[#allocation1] sm:$0xff pattern:$0x73625140]
    %v265 = vld.sshfl [vmem:[#allocation1 + $0x8] sm:$0xff pattern:$0x73625140]
    %v267 = vld.sshfl [vmem:[#allocation1 + $0x10] sm:$0xff pattern:$0x73625140]
    %v269 = vld.sshfl [vmem:[#allocation1 + $0x18] sm:$0xff pattern:$0x73625140]
    %v271 = vld.sshfl [vmem:[#allocation1 + $0x20] sm:$0xff pattern:$0x73625140]
    %v273 = vld.sshfl [vmem:[#allocation1 + $0x28] sm:$0xff pattern:$0x73625140]
    %v275 = vld.sshfl [vmem:[#allocation1 + $0x30] sm:$0xff pattern:$0x73625140]
    %v277 = vld.sshfl [vmem:[#allocation1 + $0x38] sm:$0xff pattern:$0x73625140]
    %279 = vrot.lane.b32.xlu0 %v263, 109
    %v280 = vpop.permute.xlu0 %279
    %281 = vrot.lane.b32.xlu0 %v265, 109
    %v282 = vpop.permute.xlu0 %281
    %283 = vrot.lane.b32.xlu0 %v267, 109
    %v284 = vpop.permute.xlu0 %283
    %285 = vrot.lane.b32.xlu0 %v269, 109
    %v286 = vpop.permute.xlu0 %285
    %287 = vrot.lane.b32.xlu0 %v271, 109
    %v288 = vpop.permute.xlu0 %287
    %289 = vrot.lane.b32.xlu0 %v273, 109
    %v290 = vpop.permute.xlu0 %289
    %291 = vrot.lane.b32.xlu0 %v275, 109
    %v292 = vpop.permute.xlu0 %291
    %293 = vrot.lane.b32.xlu0 %v277, 109
    %v294 = vpop.permute.xlu0 %293
    %vm295 = vcmask 891904
    %v296 = vsel %vm295, %v280, %v282
    %v297 = vsel %vm295, %v282, %v284
    %v298 = vsel %vm295, %v284, %v286
    %v299 = vsel %vm295, %v286, %v288
    %v300 = vsel %vm295, %v288, %v290
    %v301 = vsel %vm295, %v290, %v292
    %v302 = vsel %vm295, %v292, %v294
    %s304 = scalar_lea.vmem [#allocation1], 1
    %305 = vst [vmem:[%s304] ss:$4 sm:$0xff] %v89
    %s307 = scalar_lea.vmem [#allocation1], 33
    %308 = vst [vmem:[%s307] ss:$4 sm:$0xff] %v90
    %v309 = vld.sshfl [vmem:[#allocation1] sm:$0xff pattern:$0x73625140]
    %v311 = vld.sshfl [vmem:[#allocation1 + $0x8] sm:$0xff pattern:$0x73625140]
    %v313 = vld.sshfl [vmem:[#allocation1 + $0x10] sm:$0xff pattern:$0x73625140]
    %v315 = vld.sshfl [vmem:[#allocation1 + $0x18] sm:$0xff pattern:$0x73625140]
    %v317 = vld.sshfl [vmem:[#allocation1 + $0x20] sm:$0xff pattern:$0x73625140]
    %v319 = vld.sshfl [vmem:[#allocation1 + $0x28] sm:$0xff pattern:$0x73625140]
    %v321 = vld.sshfl [vmem:[#allocation1 + $0x30] sm:$0xff pattern:$0x73625140]
    %v323 = vld.sshfl [vmem:[#allocation1 + $0x38] sm:$0xff pattern:$0x73625140]
    %326 = vst [vmem:[%s304] ss:$4 sm:$0xff] %v91
    %v327 = vld.sshfl [vmem:[#allocation1] sm:$0xff pattern:$0x73625140]
    %329 = vrot.lane.b32.xlu0 %v309, 108
    %v330 = vpop.permute.xlu0 %329
    %331 = vrot.lane.b32.xlu0 %v311, 108
    %v332 = vpop.permute.xlu0 %331
    %333 = vrot.lane.b32.xlu0 %v313, 108
    %v334 = vpop.permute.xlu0 %333
    %335 = vrot.lane.b32.xlu0 %v315, 108
    %v336 = vpop.permute.xlu0 %335
    %337 = vrot.lane.b32.xlu0 %v317, 108
    %v338 = vpop.permute.xlu0 %337
    %339 = vrot.lane.b32.xlu0 %v319, 108
    %v340 = vpop.permute.xlu0 %339
    %341 = vrot.lane.b32.xlu0 %v321, 108
    %v342 = vpop.permute.xlu0 %341
    %343 = vrot.lane.b32.xlu0 %v323, 108
    %v344 = vpop.permute.xlu0 %343
    %345 = vrot.lane.b32.xlu0 %v327, 108
    %v346 = vpop.permute.xlu0 %345
    %vm347 = vcmask 883712
    %v348 = vsel %vm347, %v330, %v332
    %v349 = vsel %vm347, %v332, %v334
    %v350 = vsel %vm347, %v334, %v336
    %v351 = vsel %vm347, %v336, %v338
    %v352 = vsel %vm347, %v338, %v340
    %v353 = vsel %vm347, %v340, %v342
    %v354 = vsel %vm347, %v342, %v344
    %v355 = vsel %vm347, %v344, %v346
    %s356 = scalar_lea.vmem [#allocation1], 2
    %357 = vst [vmem:[%s356] ss:$4 sm:$0xff] %v89
    %s358 = scalar_lea.vmem [#allocation1], 34
    %359 = vst [vmem:[%s358] ss:$4 sm:$0xff] %v90
    %v360 = vld.sshfl [vmem:[#allocation1] sm:$0xff pattern:$0x73625140]
    %v362 = vld.sshfl [vmem:[#allocation1 + $0x8] sm:$0xff pattern:$0x73625140]
    %v364 = vld.sshfl [vmem:[#allocation1 + $0x10] sm:$0xff pattern:$0x73625140]
    %v366 = vld.sshfl [vmem:[#allocation1 + $0x18] sm:$0xff pattern:$0x73625140]
    %v368 = vld.sshfl [vmem:[#allocation1 + $0x20] sm:$0xff pattern:$0x73625140]
    %v370 = vld.sshfl [vmem:[#allocation1 + $0x28] sm:$0xff pattern:$0x73625140]
    %v372 = vld.sshfl [vmem:[#allocation1 + $0x30] sm:$0xff pattern:$0x73625140]
    %v374 = vld.sshfl [vmem:[#allocation1 + $0x38] sm:$0xff pattern:$0x73625140]
    %376 = vst [vmem:[%s356] ss:$4 sm:$0xff] %v91
    %v377 = vld.sshfl [vmem:[#allocation1] sm:$0xff pattern:$0x73625140]
    %379 = vrot.lane.b32.xlu0 %v360, 92
    %v380 = vpop.permute.xlu0 %379
    %381 = vrot.lane.b32.xlu0 %v362, 92
    %v382 = vpop.permute.xlu0 %381
    %383 = vrot.lane.b32.xlu0 %v364, 92
    %v384 = vpop.permute.xlu0 %383
    %385 = vrot.lane.b32.xlu0 %v366, 92
    %v386 = vpop.permute.xlu0 %385
    %387 = vrot.lane.b32.xlu0 %v368, 92
    %v388 = vpop.permute.xlu0 %387
    %389 = vrot.lane.b32.xlu0 %v370, 92
    %v390 = vpop.permute.xlu0 %389
    %391 = vrot.lane.b32.xlu0 %v372, 92
    %v392 = vpop.permute.xlu0 %391
    %393 = vrot.lane.b32.xlu0 %v374, 92
    %v394 = vpop.permute.xlu0 %393
    %395 = vrot.lane.b32.xlu0 %v377, 92
    %v396 = vpop.permute.xlu0 %395
    %vm397 = vcmask 752640
    %v398 = vsel %vm397, %v380, %v382
    %v399 = vsel %vm397, %v382, %v384
    %v400 = vsel %vm397, %v384, %v386
    %v401 = vsel %vm397, %v386, %v388
    %v402 = vsel %vm397, %v388, %v390
    %v403 = vsel %vm397, %v390, %v392
    %v404 = vsel %vm397, %v392, %v394
    %v405 = vsel %vm397, %v394, %v396
    %s406 = scalar_lea.vmem [#allocation1], 3
    %407 = vst [vmem:[%s406] ss:$4 sm:$0xff] %v89
    %s408 = scalar_lea.vmem [#allocation1], 35
    %409 = vst [vmem:[%s408] ss:$4 sm:$0xff] %v90
    %v410 = vld.sshfl [vmem:[#allocation1] sm:$0xff pattern:$0x73625140]
    %v412 = vld.sshfl [vmem:[#allocation1 + $0x8] sm:$0xff pattern:$0x73625140]
    %v414 = vld.sshfl [vmem:[#allocation1 + $0x10] sm:$0xff pattern:$0x73625140]
    %v416 = vld.sshfl [vmem:[#allocation1 + $0x18] sm:$0xff pattern:$0x73625140]
    %v418 = vld.sshfl [vmem:[#allocation1 + $0x20] sm:$0xff pattern:$0x73625140]
    %v420 = vld.sshfl [vmem:[#allocation1 + $0x28] sm:$0xff pattern:$0x73625140]
    %v422 = vld.sshfl [vmem:[#allocation1 + $0x30] sm:$0xff pattern:$0x73625140]
    %v424 = vld.sshfl [vmem:[#allocation1 + $0x38] sm:$0xff pattern:$0x73625140]
    %426 = vst [vmem:[%s406] ss:$4 sm:$0xff] %v91
    %v427 = vld.sshfl [vmem:[#allocation1] sm:$0xff pattern:$0x73625140]
    %429 = vrot.lane.b32.xlu0 %v410, 91
    %v430 = vpop.permute.xlu0 %429
    %431 = vrot.lane.b32.xlu0 %v412, 91
    %v432 = vpop.permute.xlu0 %431
    %433 = vrot.lane.b32.xlu0 %v414, 91
    %v434 = vpop.permute.xlu0 %433
    %435 = vrot.lane.b32.xlu0 %v416, 91
    %v436 = vpop.permute.xlu0 %435
    %437 = vrot.lane.b32.xlu0 %v418, 91
    %v438 = vpop.permute.xlu0 %437
    %439 = vrot.lane.b32.xlu0 %v420, 91
    %v440 = vpop.permute.xlu0 %439
    %441 = vrot.lane.b32.xlu0 %v422, 91
    %v442 = vpop.permute.xlu0 %441
    %443 = vrot.lane.b32.xlu0 %v424, 91
    %v444 = vpop.permute.xlu0 %443
    %445 = vrot.lane.b32.xlu0 %v427, 91
    %v446 = vpop.permute.xlu0 %445
    %vm447 = vcmask 744448
    %v448 = vsel %vm447, %v430, %v432
    %v449 = vsel %vm447, %v432, %v434
    %v450 = vsel %vm447, %v434, %v436
    %v451 = vsel %vm447, %v436, %v438
    %v452 = vsel %vm447, %v438, %v440
    %v453 = vsel %vm447, %v440, %v442
    %v454 = vsel %vm447, %v442, %v444
    %v455 = vsel %vm447, %v444, %v446
    %456 = vst [vmem:[#allocation1] ss:$4 sm:$0xff] %v89
    %s457 = scalar_lea.vmem [#allocation1], 32
    %458 = vst [vmem:[%s457] ss:$4 sm:$0xff] %v90
    %v459 = vld.sshfl [vmem:[#allocation1] sm:$0xff pattern:$0x73625140]
    %v461 = vld.sshfl [vmem:[#allocation1 + $0x8] sm:$0xff pattern:$0x73625140]
    %v463 = vld.sshfl [vmem:[#allocation1 + $0x10] sm:$0xff pattern:$0x73625140]
    %v465 = vld.sshfl [vmem:[#allocation1 + $0x18] sm:$0xff pattern:$0x73625140]
    %v467 = vld.sshfl [vmem:[#allocation1 + $0x20] sm:$0xff pattern:$0x73625140]
    %v469 = vld.sshfl [vmem:[#allocation1 + $0x28] sm:$0xff pattern:$0x73625140]
    %v471 = vld.sshfl [vmem:[#allocation1 + $0x30] sm:$0xff pattern:$0x73625140]
    %v473 = vld.sshfl [vmem:[#allocation1 + $0x38] sm:$0xff pattern:$0x73625140]
    %475 = vst [vmem:[#allocation1] ss:$4 sm:$0xff] %v91
    %v476 = vld.sshfl [vmem:[#allocation1] sm:$0xff pattern:$0x73625140]
    %478 = vrot.lane.b32.xlu0 %v459, 90
    %v479 = vpop.permute.xlu0 %478
    %480 = vrot.lane.b32.xlu0 %v461, 90
    %v481 = vpop.permute.xlu0 %480
    %482 = vrot.lane.b32.xlu0 %v463, 90
    %v483 = vpop.permute.xlu0 %482
    %484 = vrot.lane.b32.xlu0 %v465, 90
    %v485 = vpop.permute.xlu0 %484
    %486 = vrot.lane.b32.xlu0 %v467, 90
    %v487 = vpop.permute.xlu0 %486
    %488 = vrot.lane.b32.xlu0 %v469, 90
    %v489 = vpop.permute.xlu0 %488
    %490 = vrot.lane.b32.xlu0 %v471, 90
    %v491 = vpop.permute.xlu0 %490
    %492 = vrot.lane.b32.xlu0 %v473, 90
    %v493 = vpop.permute.xlu0 %492
    %494 = vrot.lane.b32.xlu0 %v476, 90
    %v495 = vpop.permute.xlu0 %494
    %vm496 = vcmask 736256
    %v497 = vsel %vm496, %v479, %v481
    %v498 = vsel %vm496, %v481, %v483
    %v499 = vsel %vm496, %v483, %v485
    %v500 = vsel %vm496, %v485, %v487
    %v501 = vsel %vm496, %v487, %v489
    %v502 = vsel %vm496, %v489, %v491
    %v503 = vsel %vm496, %v491, %v493
    %v504 = vsel %vm496, %v493, %v495
    %vm505 = vcmask 1041408
    %v507 = vsel %vm505, %v97, %v150
    %v509 = vsel %vm505, %v98, %v151
    %v511 = vsel %vm505, %v99, %v152
    %v513 = vsel %vm505, %v100, %v153
    %v515 = vsel %vm505, %v101, %v154
    %v517 = vsel %vm505, %v102, %v155
    %v519 = vsel %vm505, %v103, %v156
    %v521 = vsel %vm505, %v104, %v157
    %v523 = vsel %vm505, %v107, %v148
    %vm524 = vcmask 1043456
    %v526 = vsel %vm524, %v507, %v200
    %v528 = vsel %vm524, %v509, %v201
    %v530 = vsel %vm524, %v511, %v202
    %v532 = vsel %vm524, %v513, %v203
    %v534 = vsel %vm524, %v515, %v204
    %v536 = vsel %vm524, %v517, %v205
    %v538 = vsel %vm524, %v519, %v206
    %v540 = vsel %vm524, %v521, %v207
    %v542 = vsel %vm524, %v523, %v198
    %vm543 = vcmask 1045504
    %v545 = vsel %vm543, %v526, %v250
    %v547 = vsel %vm543, %v528, %v251
    %v549 = vsel %vm543, %v530, %v252
    %v551 = vsel %vm543, %v532, %v253
    %v553 = vsel %vm543, %v534, %v254
    %v555 = vsel %vm543, %v536, %v255
    %v557 = vsel %vm543, %v538, %v256
    %v559 = vsel %vm543, %v540, %v257
    %v561 = vsel %vm543, %v542, %v248
    %v564 = vsel %vm505, %v280, %v330
    %v567 = vsel %vm505, %v296, %v348
    %v570 = vsel %vm505, %v297, %v349
    %v573 = vsel %vm505, %v298, %v350
    %v576 = vsel %vm505, %v299, %v351
    %v579 = vsel %vm505, %v300, %v352
    %v582 = vsel %vm505, %v301, %v353
    %v585 = vsel %vm505, %v302, %v354
    %v588 = vsel %vm505, %v294, %v355
    %v590 = vsel %vm524, %v564, %v380
    %v592 = vsel %vm524, %v567, %v398
    %v594 = vsel %vm524, %v570, %v399
    %v596 = vsel %vm524, %v573, %v400
    %v598 = vsel %vm524, %v576, %v401
    %v600 = vsel %vm524, %v579, %v402
    %v602 = vsel %vm524, %v582, %v403
    %v604 = vsel %vm524, %v585, %v404
    %v606 = vsel %vm524, %v588, %v405
    %v608 = vsel %vm543, %v590, %v430
    %v610 = vsel %vm543, %v592, %v448
    %v612 = vsel %vm543, %v594, %v449
    %v614 = vsel %vm543, %v596, %v450
    %v616 = vsel %vm543, %v598, %v451
    %v618 = vsel %vm543, %v600, %v452
    %v620 = vsel %vm543, %v602, %v453
    %v622 = vsel %vm543, %v604, %v454
    %v624 = vsel %vm543, %v606, %v455
    %v625 = vld [vmem:[%s4] sm:$0xf]
    %627 = vset.pattern.permute.xlu0 0
    %628 = vperm.xlu0 %627, %v625
    %v629 = vpop.permute.xlu0 %628
    %649 = vrot.lane.b32.xlu0 %v545, 19
    %v650 = vpop.permute.xlu0 %649
    %651 = vrot.lane.b32.xlu0 %v547, 19
    %v652 = vpop.permute.xlu0 %651
    %653 = vrot.lane.b32.xlu0 %v549, 19
    %v654 = vpop.permute.xlu0 %653
    %655 = vrot.lane.b32.xlu0 %v551, 19
    %v656 = vpop.permute.xlu0 %655
    %657 = vrot.lane.b32.xlu0 %v553, 19
    %v658 = vpop.permute.xlu0 %657
    %659 = vrot.lane.b32.xlu0 %v555, 19
    %v660 = vpop.permute.xlu0 %659
    %661 = vrot.lane.b32.xlu0 %v557, 19
    %v662 = vpop.permute.xlu0 %661
    %663 = vrot.lane.b32.xlu0 %v559, 19
    %v664 = vpop.permute.xlu0 %663
    %665 = vrot.lane.b32.xlu0 %v561, 19
    %v666 = vpop.permute.xlu0 %665
    %667 = vrot.lane.b32.xlu0 %v608, 19
    %v668 = vpop.permute.xlu0 %667
    %669 = vrot.lane.b32.xlu0 %v610, 19
    %v670 = vpop.permute.xlu0 %669
    %671 = vrot.lane.b32.xlu0 %v612, 19
    %v672 = vpop.permute.xlu0 %671
    %673 = vrot.lane.b32.xlu0 %v614, 19
    %v674 = vpop.permute.xlu0 %673
    %675 = vrot.lane.b32.xlu0 %v616, 19
    %v676 = vpop.permute.xlu0 %675
    %677 = vrot.lane.b32.xlu0 %v618, 19
    %v678 = vpop.permute.xlu0 %677
    %679 = vrot.lane.b32.xlu0 %v620, 19
    %v680 = vpop.permute.xlu0 %679
    %681 = vrot.lane.b32.xlu0 %v622, 19
    %v682 = vpop.permute.xlu0 %681
    %683 = vrot.lane.b32.xlu0 %v624, 19
    %v684 = vpop.permute.xlu0 %683
    %685 = vrot.lane.b32.xlu0 %v479, 19
    %v686 = vpop.permute.xlu0 %685
    %687 = vrot.lane.b32.xlu0 %v497, 19
    %v688 = vpop.permute.xlu0 %687
    %689 = vrot.lane.b32.xlu0 %v498, 19
    %v690 = vpop.permute.xlu0 %689
    %691 = vrot.lane.b32.xlu0 %v499, 19
    %v692 = vpop.permute.xlu0 %691
    %693 = vrot.lane.b32.xlu0 %v500, 19
    %v694 = vpop.permute.xlu0 %693
    %695 = vrot.lane.b32.xlu0 %v501, 19
    %v696 = vpop.permute.xlu0 %695
    %697 = vrot.lane.b32.xlu0 %v502, 19
    %v698 = vpop.permute.xlu0 %697
    %699 = vrot.lane.b32.xlu0 %v503, 19
    %v700 = vpop.permute.xlu0 %699
    %701 = vrot.lane.b32.xlu0 %v504, 19
    %v702 = vpop.permute.xlu0 %701
    %vm703 = vcmask 154624
    %v704 = vsel %vm703, %v650, %v652
    %v705 = vsel %vm703, %v652, %v654
    %v706 = vsel %vm703, %v654, %v656
    %v707 = vsel %vm703, %v656, %v658
    %v708 = vsel %vm703, %v658, %v660
    %v709 = vsel %vm703, %v660, %v662
    %v710 = vsel %vm703, %v662, %v664
    %v711 = vsel %vm703, %v664, %v666
    %v712 = vsel %vm703, %v668, %v670
    %v713 = vsel %vm703, %v670, %v672
    %v714 = vsel %vm703, %v672, %v674
    %v715 = vsel %vm703, %v674, %v676
    %v716 = vsel %vm703, %v676, %v678
    %v717 = vsel %vm703, %v678, %v680
    %v718 = vsel %vm703, %v680, %v682
    %v719 = vsel %vm703, %v682, %v684
    %v720 = vsel %vm703, %v686, %v688
    %v721 = vsel %vm703, %v688, %v690
    %v722 = vsel %vm703, %v690, %v692
    %v723 = vsel %vm703, %v692, %v694
    %v724 = vsel %vm703, %v694, %v696
    %v725 = vsel %vm703, %v696, %v698
    %v726 = vsel %vm703, %v698, %v700
    %v727 = vsel %vm703, %v700, %v702
    %vm744 = vcmask 293888
    %v746 = vsel %vm744, %v83, 0
    %v749 = vsel %vm505, %v720, 0
    %v752 = vsel %vm505, %v721, 0
    %v755 = vsel %vm505, %v722, 0
    %v758 = vsel %vm505, %v723, 0
    %v761 = vsel %vm505, %v724, 0
    %v764 = vsel %vm505, %v725, 0
    %v767 = vsel %vm505, %v726, 0
    %v770 = vsel %vm505, %v727, 0
    %772 = vmatpush.bf16.msra.mxu0 0
    %773 = vmatpush.bf16.msra.mxu0 0
    %774 = vmatpush.bf16.msra.mxu0 0
    %775 = vmatpush.bf16.msra.mxu0 0
    %776 = vmatpush.bf16.msra.mxu0 0
    %777 = vmatpush.bf16.msra.mxu0 %v749
    %778 = vmatpush.bf16.msra.mxu0 %v712
    %779 = vmatpush.bf16.msra.mxu0 %v704
    %780 = vmatmul.bf16.gmra.mxu0 %v746
    %v781 = vpop.f32.mrf.mxu0
    %v782 = vadd.f32 %v629, %v781
    %v783 = vpop.f32.mrf.mxu0
    %784 = vdwg.mxu0
    %785 = vmatpush.bf16.msra.mxu0 0
    %786 = vmatpush.bf16.msra.mxu0 0
    %787 = vmatpush.bf16.msra.mxu0 0
    %788 = vmatpush.bf16.msra.mxu0 0
    %789 = vmatpush.bf16.msra.mxu0 0
    %790 = vmatpush.bf16.msra.mxu0 %v752
    %791 = vmatpush.bf16.msra.mxu0 %v713
    %792 = vmatpush.bf16.msra.mxu0 %v705
    %793 = vmatmul.bf16.gmra.mxu0 %v746
    %v794 = vpop.f32.mrf.mxu0
    %v795 = vadd.f32 %v629, %v794
    %v796 = vpop.f32.mrf.mxu0
    %797 = vdwg.mxu0
    %798 = vmatpush.bf16.msra.mxu0 0
    %799 = vmatpush.bf16.msra.mxu0 0
    %800 = vmatpush.bf16.msra.mxu0 0
    %801 = vmatpush.bf16.msra.mxu0 0
    %802 = vmatpush.bf16.msra.mxu0 0
    %803 = vmatpush.bf16.msra.mxu0 %v755
    %804 = vmatpush.bf16.msra.mxu0 %v714
    %805 = vmatpush.bf16.msra.mxu0 %v706
    %806 = vmatmul.bf16.gmra.mxu0 %v746
    %v807 = vpop.f32.mrf.mxu0
    %v808 = vadd.f32 %v629, %v807
    %v809 = vpop.f32.mrf.mxu0
    %810 = vdwg.mxu0
    %811 = vmatpush.bf16.msra.mxu0 0
    %812 = vmatpush.bf16.msra.mxu0 0
    %813 = vmatpush.bf16.msra.mxu0 0
    %814 = vmatpush.bf16.msra.mxu0 0
    %815 = vmatpush.bf16.msra.mxu0 0
    %816 = vmatpush.bf16.msra.mxu0 %v758
    %817 = vmatpush.bf16.msra.mxu0 %v715
    %818 = vmatpush.bf16.msra.mxu0 %v707
    %819 = vmatmul.bf16.gmra.mxu0 %v746
    %v820 = vpop.f32.mrf.mxu0
    %v821 = vadd.f32 %v629, %v820
    %v822 = vpop.f32.mrf.mxu0
    %823 = vdwg.mxu0
    %824 = vmatpush.bf16.msra.mxu0 0
    %825 = vmatpush.bf16.msra.mxu0 0
    %826 = vmatpush.bf16.msra.mxu0 0
    %827 = vmatpush.bf16.msra.mxu0 0
    %828 = vmatpush.bf16.msra.mxu0 0
    %829 = vmatpush.bf16.msra.mxu0 %v761
    %830 = vmatpush.bf16.msra.mxu0 %v716
    %831 = vmatpush.bf16.msra.mxu0 %v708
    %832 = vmatmul.bf16.gmra.mxu0 %v746
    %v833 = vpop.f32.mrf.mxu0
    %v834 = vadd.f32 %v629, %v833
    %v835 = vpop.f32.mrf.mxu0
    %836 = vdwg.mxu0
    %837 = vmatpush.bf16.msra.mxu0 0
    %838 = vmatpush.bf16.msra.mxu0 0
    %839 = vmatpush.bf16.msra.mxu0 0
    %840 = vmatpush.bf16.msra.mxu0 0
    %841 = vmatpush.bf16.msra.mxu0 0
    %842 = vmatpush.bf16.msra.mxu0 %v764
    %843 = vmatpush.bf16.msra.mxu0 %v717
    %844 = vmatpush.bf16.msra.mxu0 %v709
    %845 = vmatmul.bf16.gmra.mxu0 %v746
    %v846 = vpop.f32.mrf.mxu0
    %v847 = vadd.f32 %v629, %v846
    %v848 = vpop.f32.mrf.mxu0
    %849 = vdwg.mxu0
    %850 = vmatpush.bf16.msra.mxu0 0
    %851 = vmatpush.bf16.msra.mxu0 0
    %852 = vmatpush.bf16.msra.mxu0 0
    %853 = vmatpush.bf16.msra.mxu0 0
    %854 = vmatpush.bf16.msra.mxu0 0
    %855 = vmatpush.bf16.msra.mxu0 %v767
    %856 = vmatpush.bf16.msra.mxu0 %v718
    %857 = vmatpush.bf16.msra.mxu0 %v710
    %858 = vmatmul.bf16.gmra.mxu0 %v746
    %v859 = vpop.f32.mrf.mxu0
    %v860 = vadd.f32 %v629, %v859
    %v861 = vpop.f32.mrf.mxu0
    %862 = vdwg.mxu0
    %863 = vmatpush.bf16.msra.mxu0 0
    %864 = vmatpush.bf16.msra.mxu0 0
    %865 = vmatpush.bf16.msra.mxu0 0
    %866 = vmatpush.bf16.msra.mxu0 0
    %867 = vmatpush.bf16.msra.mxu0 0
    %868 = vmatpush.bf16.msra.mxu0 %v770
    %869 = vmatpush.bf16.msra.mxu0 %v719
    %870 = vmatpush.bf16.msra.mxu0 %v711
    %871 = vmatmul.bf16.gmra.mxu0 %v746
    %v872 = vpop.f32.mrf.mxu0
    %v873 = vadd.f32 %v629, %v872
    %v874 = vpop.f32.mrf.mxu0
    %875 = vdwg.mxu0
    %v876 = vmax.f32 %v782, 0.0
    %v877 = vmax.f32 %v795, 0.0
    %v878 = vmax.f32 %v808, 0.0
    %v879 = vmax.f32 %v821, 0.0
    %v880 = vmax.f32 %v834, 0.0
    %v881 = vmax.f32 %v847, 0.0
    %v882 = vmax.f32 %v860, 0.0
    %v883 = vmax.f32 %v873, 0.0
    %v884 = vld [vmem:[%s6] sm:$0xff]
    %v886 = vperm.slane %v884, 0
    %v887 = vperm.slane %v884, 1
    %v888 = vperm.slane %v884, 2
    %v889 = vperm.slane %v884, 3
    %v890 = vperm.slane %v884, 4
    %v891 = vperm.slane %v884, 5
    %v892 = vperm.slane %v884, 6
    %v893 = vperm.slane %v884, 7
    %v902 = vmul.f32 %v876, %v886
    %v903 = vmul.f32 %v877, %v887
    %v904 = vmul.f32 %v878, %v888
    %v905 = vmul.f32 %v879, %v889
    %v906 = vmul.f32 %v880, %v890
    %v907 = vmul.f32 %v881, %v891
    %v908 = vmul.f32 %v882, %v892
    %v909 = vmul.f32 %v883, %v893
    %v910 = vpack.c.bf16 %v903, %v902
    %v911 = vpack.c.bf16 %v905, %v904
    %v912 = vpack.c.bf16 %v907, %v906
    %v913 = vpack.c.bf16 %v909, %v908
    %v918 = vrot.slane %v910, 2
    %v919 = vrot.slane %v911, 4
    %v920 = vrot.slane %v911, 6
    %v921 = vrot.slane %v912, 2
    %v922 = vrot.slane %v913, 4
    %v923 = vrot.slane %v913, 6
    %v926 = vsel %vm505, %v910, %v918
    %vm927 = vcmask 1045508
    %v930 = vsel %vm927, %v919, %v920
    %v931 = vsel %vm524, %v926, %v930
    %v934 = vsel %vm505, %v912, %v921
    %v937 = vsel %vm927, %v922, %v923
    %v938 = vsel %vm524, %v934, %v937
    %941 = vst [vmem:[#allocation2] sm:$0xff] %v931
    %942 = vst [vmem:[#allocation2 + $0x8] sm:$0xff] %v938
    %v943 = vld [vmem:[#allocation9] sm:$0x3]
    %v944 = vld [vmem:[#allocation2] sm:$0xff]
    %v945 = vld [vmem:[#allocation2 + $0x8] sm:$0x3f]
    %v946 = vld [vmem:[#allocation2 + $0x2] sm:$0xff]
    %v947 = vld [vmem:[#allocation2 + $0xa] sm:$0xf]
    %v948 = vld [vmem:[#allocation2 + $0x2] sm:$0xff]
    %v949 = vld [vmem:[#allocation2 + $0xa] sm:$0x3f]
    %951 = vst [vmem:[#allocation1] ss:$4 sm:$0xff] %v944
    %s953 = scalar_lea.vmem [#allocation1], 32
    %954 = vst [vmem:[%s953] ss:$4 sm:$0xff] %v945
    %v955 = vld.sshfl [vmem:[#allocation1] sm:$0xff pattern:$0x73625140]
    %v956 = vld.sshfl [vmem:[#allocation1 + $0x8] sm:$0xff pattern:$0x73625140]
    %v957 = vld.sshfl [vmem:[#allocation1 + $0x10] sm:$0xff pattern:$0x73625140]
    %v958 = vld.sshfl [vmem:[#allocation1 + $0x18] sm:$0xff pattern:$0x73625140]
    %v959 = vld.sshfl [vmem:[#allocation1 + $0x20] sm:$0xff pattern:$0x73625140]
    %v960 = vld.sshfl [vmem:[#allocation1 + $0x28] sm:$0xff pattern:$0x73625140]
    %v961 = vld.sshfl [vmem:[#allocation1 + $0x30] sm:$0xff pattern:$0x73625140]
    %s962 = scalar_lea.vmem [#allocation1], 1
    %963 = vst [vmem:[%s962] ss:$4 sm:$0xff] %v944
    %s964 = scalar_lea.vmem [#allocation1], 33
    %965 = vst [vmem:[%s964] ss:$4 sm:$0xff] %v945
    %v966 = vld.sshfl [vmem:[#allocation1] sm:$0xff pattern:$0x73625140]
    %v968 = vld.sshfl [vmem:[#allocation1 + $0x8] sm:$0xff pattern:$0x73625140]
    %v970 = vld.sshfl [vmem:[#allocation1 + $0x10] sm:$0xff pattern:$0x73625140]
    %v972 = vld.sshfl [vmem:[#allocation1 + $0x18] sm:$0xff pattern:$0x73625140]
    %v974 = vld.sshfl [vmem:[#allocation1 + $0x20] sm:$0xff pattern:$0x73625140]
    %v976 = vld.sshfl [vmem:[#allocation1 + $0x28] sm:$0xff pattern:$0x73625140]
    %v978 = vld.sshfl [vmem:[#allocation1 + $0x30] sm:$0xff pattern:$0x73625140]
    %980 = vrot.lane.b32.xlu0 %v966, 127
    %v981 = vpop.permute.xlu0 %980
    %982 = vrot.lane.b32.xlu0 %v968, 127
    %v983 = vpop.permute.xlu0 %982
    %984 = vrot.lane.b32.xlu0 %v970, 127
    %v985 = vpop.permute.xlu0 %984
    %986 = vrot.lane.b32.xlu0 %v972, 127
    %v987 = vpop.permute.xlu0 %986
    %988 = vrot.lane.b32.xlu0 %v974, 127
    %v989 = vpop.permute.xlu0 %988
    %990 = vrot.lane.b32.xlu0 %v976, 127
    %v991 = vpop.permute.xlu0 %990
    %992 = vrot.lane.b32.xlu0 %v978, 127
    %v993 = vpop.permute.xlu0 %992
    %v994 = vsel %vm149, %v981, %v983
    %v995 = vsel %vm149, %v983, %v985
    %v996 = vsel %vm149, %v985, %v987
    %v997 = vsel %vm149, %v987, %v989
    %v998 = vsel %vm149, %v989, %v991
    %v999 = vsel %vm149, %v991, %v993
    %s1000 = scalar_lea.vmem [#allocation1], 2
    %1001 = vst [vmem:[%s1000] ss:$4 sm:$0xff] %v944
    %s1002 = scalar_lea.vmem [#allocation1], 34
    %1003 = vst [vmem:[%s1002] ss:$4 sm:$0xff] %v945
    %v1004 = vld.sshfl [vmem:[#allocation1] sm:$0xff pattern:$0x73625140]
    %v1006 = vld.sshfl [vmem:[#allocation1 + $0x8] sm:$0xff pattern:$0x73625140]
    %v1008 = vld.sshfl [vmem:[#allocation1 + $0x10] sm:$0xff pattern:$0x73625140]
    %v1010 = vld.sshfl [vmem:[#allocation1 + $0x18] sm:$0xff pattern:$0x73625140]
    %v1012 = vld.sshfl [vmem:[#allocation1 + $0x20] sm:$0xff pattern:$0x73625140]
    %v1014 = vld.sshfl [vmem:[#allocation1 + $0x28] sm:$0xff pattern:$0x73625140]
    %v1016 = vld.sshfl [vmem:[#allocation1 + $0x30] sm:$0xff pattern:$0x73625140]
    %1018 = vrot.lane.b32.xlu0 %v1004, 126
    %v1019 = vpop.permute.xlu0 %1018
    %1020 = vrot.lane.b32.xlu0 %v1006, 126
    %v1021 = vpop.permute.xlu0 %1020
    %1022 = vrot.lane.b32.xlu0 %v1008, 126
    %v1023 = vpop.permute.xlu0 %1022
    %1024 = vrot.lane.b32.xlu0 %v1010, 126
    %v1025 = vpop.permute.xlu0 %1024
    %1026 = vrot.lane.b32.xlu0 %v1012, 126
    %v1027 = vpop.permute.xlu0 %1026
    %1028 = vrot.lane.b32.xlu0 %v1014, 126
    %v1029 = vpop.permute.xlu0 %1028
    %1030 = vrot.lane.b32.xlu0 %v1016, 126
    %v1031 = vpop.permute.xlu0 %1030
    %v1032 = vsel %vm199, %v1019, %v1021
    %v1033 = vsel %vm199, %v1021, %v1023
    %v1034 = vsel %vm199, %v1023, %v1025
    %v1035 = vsel %vm199, %v1025, %v1027
    %v1036 = vsel %vm199, %v1027, %v1029
    %v1037 = vsel %vm199, %v1029, %v1031
    %s1038 = scalar_lea.vmem [#allocation1], 3
    %1039 = vst [vmem:[%s1038] ss:$4 sm:$0xff] %v944
    %s1040 = scalar_lea.vmem [#allocation1], 35
    %1041 = vst [vmem:[%s1040] ss:$4 sm:$0xff] %v945
    %v1042 = vld.sshfl [vmem:[#allocation1] sm:$0xff pattern:$0x73625140]
    %v1044 = vld.sshfl [vmem:[#allocation1 + $0x8] sm:$0xff pattern:$0x73625140]
    %v1046 = vld.sshfl [vmem:[#allocation1 + $0x10] sm:$0xff pattern:$0x73625140]
    %v1048 = vld.sshfl [vmem:[#allocation1 + $0x18] sm:$0xff pattern:$0x73625140]
    %v1050 = vld.sshfl [vmem:[#allocation1 + $0x20] sm:$0xff pattern:$0x73625140]
    %v1052 = vld.sshfl [vmem:[#allocation1 + $0x28] sm:$0xff pattern:$0x73625140]
    %v1054 = vld.sshfl [vmem:[#allocation1 + $0x30] sm:$0xff pattern:$0x73625140]
    %1056 = vrot.lane.b32.xlu0 %v1042, 110
    %v1057 = vpop.permute.xlu0 %1056
    %1058 = vrot.lane.b32.xlu0 %v1044, 110
    %v1059 = vpop.permute.xlu0 %1058
    %1060 = vrot.lane.b32.xlu0 %v1046, 110
    %v1061 = vpop.permute.xlu0 %1060
    %1062 = vrot.lane.b32.xlu0 %v1048, 110
    %v1063 = vpop.permute.xlu0 %1062
    %1064 = vrot.lane.b32.xlu0 %v1050, 110
    %v1065 = vpop.permute.xlu0 %1064
    %1066 = vrot.lane.b32.xlu0 %v1052, 110
    %v1067 = vpop.permute.xlu0 %1066
    %1068 = vrot.lane.b32.xlu0 %v1054, 110
    %v1069 = vpop.permute.xlu0 %1068
    %v1070 = vsel %vm249, %v1057, %v1059
    %v1071 = vsel %vm249, %v1059, %v1061
    %v1072 = vsel %vm249, %v1061, %v1063
    %v1073 = vsel %vm249, %v1063, %v1065
    %v1074 = vsel %vm249, %v1065, %v1067
    %v1075 = vsel %vm249, %v1067, %v1069
    %1077 = vst [vmem:[#allocation1] ss:$4 sm:$0xff] %v946
    %s1079 = scalar_lea.vmem [#allocation1], 32
    %1080 = vst [vmem:[%s1079] ss:$4 sm:$0xff] %v947
    %v1081 = vld.sshfl [vmem:[#allocation1] sm:$0xff pattern:$0x73625140]
    %v1083 = vld.sshfl [vmem:[#allocation1 + $0x8] sm:$0xff pattern:$0x73625140]
    %v1085 = vld.sshfl [vmem:[#allocation1 + $0x10] sm:$0xff pattern:$0x73625140]
    %v1087 = vld.sshfl [vmem:[#allocation1 + $0x18] sm:$0xff pattern:$0x73625140]
    %v1089 = vld.sshfl [vmem:[#allocation1 + $0x20] sm:$0xff pattern:$0x73625140]
    %v1091 = vld.sshfl [vmem:[#allocation1 + $0x28] sm:$0xff pattern:$0x73625140]
    %1093 = vrot.lane.b32.xlu0 %v1081, 109
    %v1094 = vpop.permute.xlu0 %1093
    %1095 = vrot.lane.b32.xlu0 %v1083, 109
    %v1096 = vpop.permute.xlu0 %1095
    %1097 = vrot.lane.b32.xlu0 %v1085, 109
    %v1098 = vpop.permute.xlu0 %1097
    %1099 = vrot.lane.b32.xlu0 %v1087, 109
    %v1100 = vpop.permute.xlu0 %1099
    %1101 = vrot.lane.b32.xlu0 %v1089, 109
    %v1102 = vpop.permute.xlu0 %1101
    %1103 = vrot.lane.b32.xlu0 %v1091, 109
    %v1104 = vpop.permute.xlu0 %1103
    %v1105 = vsel %vm295, %v1094, %v1096
    %v1106 = vsel %vm295, %v1096, %v1098
    %v1107 = vsel %vm295, %v1098, %v1100
    %v1108 = vsel %vm295, %v1100, %v1102
    %v1109 = vsel %vm295, %v1102, %v1104
    %s1111 = scalar_lea.vmem [#allocation1], 1
    %1112 = vst [vmem:[%s1111] ss:$4 sm:$0xff] %v948
    %s1114 = scalar_lea.vmem [#allocation1], 33
    %1115 = vst [vmem:[%s1114] ss:$4 sm:$0xff] %v949
    %v1116 = vld.sshfl [vmem:[#allocation1] sm:$0xff pattern:$0x73625140]
    %v1118 = vld.sshfl [vmem:[#allocation1 + $0x8] sm:$0xff pattern:$0x73625140]
    %v1120 = vld.sshfl [vmem:[#allocation1 + $0x10] sm:$0xff pattern:$0x73625140]
    %v1122 = vld.sshfl [vmem:[#allocation1 + $0x18] sm:$0xff pattern:$0x73625140]
    %v1124 = vld.sshfl [vmem:[#allocation1 + $0x20] sm:$0xff pattern:$0x73625140]
    %v1126 = vld.sshfl [vmem:[#allocation1 + $0x28] sm:$0xff pattern:$0x73625140]
    %v1128 = vld.sshfl [vmem:[#allocation1 + $0x30] sm:$0xff pattern:$0x73625140]
    %1130 = vrot.lane.b32.xlu0 %v1116, 108
    %v1131 = vpop.permute.xlu0 %1130
    %1132 = vrot.lane.b32.xlu0 %v1118, 108
    %v1133 = vpop.permute.xlu0 %1132
    %1134 = vrot.lane.b32.xlu0 %v1120, 108
    %v1135 = vpop.permute.xlu0 %1134
    %1136 = vrot.lane.b32.xlu0 %v1122, 108
    %v1137 = vpop.permute.xlu0 %1136
    %1138 = vrot.lane.b32.xlu0 %v1124, 108
    %v1139 = vpop.permute.xlu0 %1138
    %1140 = vrot.lane.b32.xlu0 %v1126, 108
    %v1141 = vpop.permute.xlu0 %1140
    %1142 = vrot.lane.b32.xlu0 %v1128, 108
    %v1143 = vpop.permute.xlu0 %1142
    %v1144 = vsel %vm347, %v1131, %v1133
    %v1145 = vsel %vm347, %v1133, %v1135
    %v1146 = vsel %vm347, %v1135, %v1137
    %v1147 = vsel %vm347, %v1137, %v1139
    %v1148 = vsel %vm347, %v1139, %v1141
    %v1149 = vsel %vm347, %v1141, %v1143
    %s1150 = scalar_lea.vmem [#allocation1], 2
    %1151 = vst [vmem:[%s1150] ss:$4 sm:$0xff] %v948
    %s1152 = scalar_lea.vmem [#allocation1], 34
    %1153 = vst [vmem:[%s1152] ss:$4 sm:$0xff] %v949
    %v1154 = vld.sshfl [vmem:[#allocation1] sm:$0xff pattern:$0x73625140]
    %v1156 = vld.sshfl [vmem:[#allocation1 + $0x8] sm:$0xff pattern:$0x73625140]
    %v1158 = vld.sshfl [vmem:[#allocation1 + $0x10] sm:$0xff pattern:$0x73625140]
    %v1160 = vld.sshfl [vmem:[#allocation1 + $0x18] sm:$0xff pattern:$0x73625140]
    %v1162 = vld.sshfl [vmem:[#allocation1 + $0x20] sm:$0xff pattern:$0x73625140]
    %v1164 = vld.sshfl [vmem:[#allocation1 + $0x28] sm:$0xff pattern:$0x73625140]
    %v1166 = vld.sshfl [vmem:[#allocation1 + $0x30] sm:$0xff pattern:$0x73625140]
    %1168 = vrot.lane.b32.xlu0 %v1154, 92
    %v1169 = vpop.permute.xlu0 %1168
    %1170 = vrot.lane.b32.xlu0 %v1156, 92
    %v1171 = vpop.permute.xlu0 %1170
    %1172 = vrot.lane.b32.xlu0 %v1158, 92
    %v1173 = vpop.permute.xlu0 %1172
    %1174 = vrot.lane.b32.xlu0 %v1160, 92
    %v1175 = vpop.permute.xlu0 %1174
    %1176 = vrot.lane.b32.xlu0 %v1162, 92
    %v1177 = vpop.permute.xlu0 %1176
    %1178 = vrot.lane.b32.xlu0 %v1164, 92
    %v1179 = vpop.permute.xlu0 %1178
    %1180 = vrot.lane.b32.xlu0 %v1166, 92
    %v1181 = vpop.permute.xlu0 %1180
    %v1182 = vsel %vm397, %v1169, %v1171
    %v1183 = vsel %vm397, %v1171, %v1173
    %v1184 = vsel %vm397, %v1173, %v1175
    %v1185 = vsel %vm397, %v1175, %v1177
    %v1186 = vsel %vm397, %v1177, %v1179
    %v1187 = vsel %vm397, %v1179, %v1181
    %s1188 = scalar_lea.vmem [#allocation1], 3
    %1189 = vst [vmem:[%s1188] ss:$4 sm:$0xff] %v948
    %s1190 = scalar_lea.vmem [#allocation1], 35
    %1191 = vst [vmem:[%s1190] ss:$4 sm:$0xff] %v949
    %v1192 = vld.sshfl [vmem:[#allocation1] sm:$0xff pattern:$0x73625140]
    %v1194 = vld.sshfl [vmem:[#allocation1 + $0x8] sm:$0xff pattern:$0x73625140]
    %v1196 = vld.sshfl [vmem:[#allocation1 + $0x10] sm:$0xff pattern:$0x73625140]
    %v1198 = vld.sshfl [vmem:[#allocation1 + $0x18] sm:$0xff pattern:$0x73625140]
    %v1200 = vld.sshfl [vmem:[#allocation1 + $0x20] sm:$0xff pattern:$0x73625140]
    %v1202 = vld.sshfl [vmem:[#allocation1 + $0x28] sm:$0xff pattern:$0x73625140]
    %v1204 = vld.sshfl [vmem:[#allocation1 + $0x30] sm:$0xff pattern:$0x73625140]
    %1206 = vrot.lane.b32.xlu0 %v1192, 91
    %v1207 = vpop.permute.xlu0 %1206
    %1208 = vrot.lane.b32.xlu0 %v1194, 91
    %v1209 = vpop.permute.xlu0 %1208
    %1210 = vrot.lane.b32.xlu0 %v1196, 91
    %v1211 = vpop.permute.xlu0 %1210
    %1212 = vrot.lane.b32.xlu0 %v1198, 91
    %v1213 = vpop.permute.xlu0 %1212
    %1214 = vrot.lane.b32.xlu0 %v1200, 91
    %v1215 = vpop.permute.xlu0 %1214
    %1216 = vrot.lane.b32.xlu0 %v1202, 91
    %v1217 = vpop.permute.xlu0 %1216
    %1218 = vrot.lane.b32.xlu0 %v1204, 91
    %v1219 = vpop.permute.xlu0 %1218
    %v1220 = vsel %vm447, %v1207, %v1209
    %v1221 = vsel %vm447, %v1209, %v1211
    %v1222 = vsel %vm447, %v1211, %v1213
    %v1223 = vsel %vm447, %v1213, %v1215
    %v1224 = vsel %vm447, %v1215, %v1217
    %v1225 = vsel %vm447, %v1217, %v1219
    %1226 = vst [vmem:[#allocation1] ss:$4 sm:$0xff] %v948
    %s1227 = scalar_lea.vmem [#allocation1], 32
    %1228 = vst [vmem:[%s1227] ss:$4 sm:$0xff] %v949
    %v1229 = vld.sshfl [vmem:[#allocation1] sm:$0xff pattern:$0x73625140]
    %v1231 = vld.sshfl [vmem:[#allocation1 + $0x8] sm:$0xff pattern:$0x73625140]
    %v1233 = vld.sshfl [vmem:[#allocation1 + $0x10] sm:$0xff pattern:$0x73625140]
    %v1235 = vld.sshfl [vmem:[#allocation1 + $0x18] sm:$0xff pattern:$0x73625140]
    %v1237 = vld.sshfl [vmem:[#allocation1 + $0x20] sm:$0xff pattern:$0x73625140]
    %v1239 = vld.sshfl [vmem:[#allocation1 + $0x28] sm:$0xff pattern:$0x73625140]
    %v1241 = vld.sshfl [vmem:[#allocation1 + $0x30] sm:$0xff pattern:$0x73625140]
    %1243 = vrot.lane.b32.xlu0 %v1229, 90
    %v1244 = vpop.permute.xlu0 %1243
    %1245 = vrot.lane.b32.xlu0 %v1231, 90
    %v1246 = vpop.permute.xlu0 %1245
    %1247 = vrot.lane.b32.xlu0 %v1233, 90
    %v1248 = vpop.permute.xlu0 %1247
    %1249 = vrot.lane.b32.xlu0 %v1235, 90
    %v1250 = vpop.permute.xlu0 %1249
    %1251 = vrot.lane.b32.xlu0 %v1237, 90
    %v1252 = vpop.permute.xlu0 %1251
    %1253 = vrot.lane.b32.xlu0 %v1239, 90
    %v1254 = vpop.permute.xlu0 %1253
    %1255 = vrot.lane.b32.xlu0 %v1241, 90
    %v1256 = vpop.permute.xlu0 %1255
    %v1257 = vsel %vm496, %v1244, %v1246
    %v1258 = vsel %vm496, %v1246, %v1248
    %v1259 = vsel %vm496, %v1248, %v1250
    %v1260 = vsel %vm496, %v1250, %v1252
    %v1261 = vsel %vm496, %v1252, %v1254
    %v1262 = vsel %vm496, %v1254, %v1256
    %v1264 = vsel %vm505, %v955, %v994
    %v1266 = vsel %vm505, %v956, %v995
    %v1268 = vsel %vm505, %v957, %v996
    %v1270 = vsel %vm505, %v958, %v997
    %v1272 = vsel %vm505, %v959, %v998
    %v1274 = vsel %vm505, %v960, %v999
    %v1276 = vsel %vm505, %v961, %v993
    %v1278 = vsel %vm524, %v1264, %v1032
    %v1280 = vsel %vm524, %v1266, %v1033
    %v1282 = vsel %vm524, %v1268, %v1034
    %v1284 = vsel %vm524, %v1270, %v1035
    %v1286 = vsel %vm524, %v1272, %v1036
    %v1288 = vsel %vm524, %v1274, %v1037
    %v1290 = vsel %vm524, %v1276, %v1031
    %v1292 = vsel %vm543, %v1278, %v1070
    %v1294 = vsel %vm543, %v1280, %v1071
    %v1296 = vsel %vm543, %v1282, %v1072
    %v1298 = vsel %vm543, %v1284, %v1073
    %v1300 = vsel %vm543, %v1286, %v1074
    %v1302 = vsel %vm543, %v1288, %v1075
    %v1304 = vsel %vm543, %v1290, %v1069
    %v1307 = vsel %vm505, %v1094, %v1131
    %v1310 = vsel %vm505, %v1105, %v1144
    %v1313 = vsel %vm505, %v1106, %v1145
    %v1316 = vsel %vm505, %v1107, %v1146
    %v1319 = vsel %vm505, %v1108, %v1147
    %v1322 = vsel %vm505, %v1109, %v1148
    %v1325 = vsel %vm505, %v1104, %v1149
    %v1327 = vsel %vm524, %v1307, %v1169
    %v1329 = vsel %vm524, %v1310, %v1182
    %v1331 = vsel %vm524, %v1313, %v1183
    %v1333 = vsel %vm524, %v1316, %v1184
    %v1335 = vsel %vm524, %v1319, %v1185
    %v1337 = vsel %vm524, %v1322, %v1186
    %v1339 = vsel %vm524, %v1325, %v1187
    %v1341 = vsel %vm543, %v1327, %v1207
    %v1343 = vsel %vm543, %v1329, %v1220
    %v1345 = vsel %vm543, %v1331, %v1221
    %v1347 = vsel %vm543, %v1333, %v1222
    %v1349 = vsel %vm543, %v1335, %v1223
    %v1351 = vsel %vm543, %v1337, %v1224
    %v1353 = vsel %vm543, %v1339, %v1225
    %v1354 = vld [vmem:[%s5] sm:$0xf]
    %1356 = vset.pattern.permute.xlu0 0
    %1357 = vperm.xlu0 %1356, %v1354
    %v1358 = vpop.permute.xlu0 %1357
    %1374 = vrot.lane.b32.xlu0 %v1292, 19
    %v1375 = vpop.permute.xlu0 %1374
    %1376 = vrot.lane.b32.xlu0 %v1294, 19
    %v1377 = vpop.permute.xlu0 %1376
    %1378 = vrot.lane.b32.xlu0 %v1296, 19
    %v1379 = vpop.permute.xlu0 %1378
    %1380 = vrot.lane.b32.xlu0 %v1298, 19
    %v1381 = vpop.permute.xlu0 %1380
    %1382 = vrot.lane.b32.xlu0 %v1300, 19
    %v1383 = vpop.permute.xlu0 %1382
    %1384 = vrot.lane.b32.xlu0 %v1302, 19
    %v1385 = vpop.permute.xlu0 %1384
    %1386 = vrot.lane.b32.xlu0 %v1304, 19
    %v1387 = vpop.permute.xlu0 %1386
    %1388 = vrot.lane.b32.xlu0 %v1341, 19
    %v1389 = vpop.permute.xlu0 %1388
    %1390 = vrot.lane.b32.xlu0 %v1343, 19
    %v1391 = vpop.permute.xlu0 %1390
    %1392 = vrot.lane.b32.xlu0 %v1345, 19
    %v1393 = vpop.permute.xlu0 %1392
    %1394 = vrot.lane.b32.xlu0 %v1347, 19
    %v1395 = vpop.permute.xlu0 %1394
    %1396 = vrot.lane.b32.xlu0 %v1349, 19
    %v1397 = vpop.permute.xlu0 %1396
    %1398 = vrot.lane.b32.xlu0 %v1351, 19
    %v1399 = vpop.permute.xlu0 %1398
    %1400 = vrot.lane.b32.xlu0 %v1353, 19
    %v1401 = vpop.permute.xlu0 %1400
    %1402 = vrot.lane.b32.xlu0 %v1244, 19
    %v1403 = vpop.permute.xlu0 %1402
    %1404 = vrot.lane.b32.xlu0 %v1257, 19
    %v1405 = vpop.permute.xlu0 %1404
    %1406 = vrot.lane.b32.xlu0 %v1258, 19
    %v1407 = vpop.permute.xlu0 %1406
    %1408 = vrot.lane.b32.xlu0 %v1259, 19
    %v1409 = vpop.permute.xlu0 %1408
    %1410 = vrot.lane.b32.xlu0 %v1260, 19
    %v1411 = vpop.permute.xlu0 %1410
    %1412 = vrot.lane.b32.xlu0 %v1261, 19
    %v1413 = vpop.permute.xlu0 %1412
    %1414 = vrot.lane.b32.xlu0 %v1262, 19
    %v1415 = vpop.permute.xlu0 %1414
    %v1416 = vsel %vm703, %v1375, %v1377
    %v1417 = vsel %vm703, %v1377, %v1379
    %v1418 = vsel %vm703, %v1379, %v1381
    %v1419 = vsel %vm703, %v1381, %v1383
    %v1420 = vsel %vm703, %v1383, %v1385
    %v1421 = vsel %vm703, %v1385, %v1387
    %v1422 = vsel %vm703, %v1389, %v1391
    %v1423 = vsel %vm703, %v1391, %v1393
    %v1424 = vsel %vm703, %v1393, %v1395
    %v1425 = vsel %vm703, %v1395, %v1397
    %v1426 = vsel %vm703, %v1397, %v1399
    %v1427 = vsel %vm703, %v1399, %v1401
    %v1428 = vsel %vm703, %v1403, %v1405
    %v1429 = vsel %vm703, %v1405, %v1407
    %v1430 = vsel %vm703, %v1407, %v1409
    %v1431 = vsel %vm703, %v1409, %v1411
    %v1432 = vsel %vm703, %v1411, %v1413
    %v1433 = vsel %vm703, %v1413, %v1415
    %v1447 = vsel %vm744, %v943, 0
    %v1450 = vsel %vm505, %v1428, 0
    %v1453 = vsel %vm505, %v1429, 0
    %v1456 = vsel %vm505, %v1430, 0
    %v1459 = vsel %vm505, %v1431, 0
    %v1462 = vsel %vm505, %v1432, 0
    %v1465 = vsel %vm505, %v1433, 0
    %1467 = vmatpush.bf16.msra.mxu0 0
    %1468 = vmatpush.bf16.msra.mxu0 0
    %1469 = vmatpush.bf16.msra.mxu0 0
    %1470 = vmatpush.bf16.msra.mxu0 0
    %1471 = vmatpush.bf16.msra.mxu0 0
    %1472 = vmatpush.bf16.msra.mxu0 %v1450
    %1473 = vmatpush.bf16.msra.mxu0 %v1422
    %1474 = vmatpush.bf16.msra.mxu0 %v1416
    %1475 = vmatmul.bf16.gmra.mxu0 %v1447
    %v1476 = vpop.f32.mrf.mxu0
    %v1477 = vadd.f32 %v1358, %v1476
    %v1478 = vpop.f32.mrf.mxu0
    %1479 = vdwg.mxu0
    %1480 = vmatpush.bf16.msra.mxu0 0
    %1481 = vmatpush.bf16.msra.mxu0 0
    %1482 = vmatpush.bf16.msra.mxu0 0
    %1483 = vmatpush.bf16.msra.mxu0 0
    %1484 = vmatpush.bf16.msra.mxu0 0
    %1485 = vmatpush.bf16.msra.mxu0 %v1453
    %1486 = vmatpush.bf16.msra.mxu0 %v1423
    %1487 = vmatpush.bf16.msra.mxu0 %v1417
    %1488 = vmatmul.bf16.gmra.mxu0 %v1447
    %v1489 = vpop.f32.mrf.mxu0
    %v1490 = vadd.f32 %v1358, %v1489
    %v1491 = vpop.f32.mrf.mxu0
    %1492 = vdwg.mxu0
    %1493 = vmatpush.bf16.msra.mxu0 0
    %1494 = vmatpush.bf16.msra.mxu0 0
    %1495 = vmatpush.bf16.msra.mxu0 0
    %1496 = vmatpush.bf16.msra.mxu0 0
    %1497 = vmatpush.bf16.msra.mxu0 0
    %1498 = vmatpush.bf16.msra.mxu0 %v1456
    %1499 = vmatpush.bf16.msra.mxu0 %v1424
    %1500 = vmatpush.bf16.msra.mxu0 %v1418
    %1501 = vmatmul.bf16.gmra.mxu0 %v1447
    %v1502 = vpop.f32.mrf.mxu0
    %v1503 = vadd.f32 %v1358, %v1502
    %v1504 = vpop.f32.mrf.mxu0
    %1505 = vdwg.mxu0
    %1506 = vmatpush.bf16.msra.mxu0 0
    %1507 = vmatpush.bf16.msra.mxu0 0
    %1508 = vmatpush.bf16.msra.mxu0 0
    %1509 = vmatpush.bf16.msra.mxu0 0
    %1510 = vmatpush.bf16.msra.mxu0 0
    %1511 = vmatpush.bf16.msra.mxu0 %v1459
    %1512 = vmatpush.bf16.msra.mxu0 %v1425
    %1513 = vmatpush.bf16.msra.mxu0 %v1419
    %1514 = vmatmul.bf16.gmra.mxu0 %v1447
    %v1515 = vpop.f32.mrf.mxu0
    %v1516 = vadd.f32 %v1358, %v1515
    %v1517 = vpop.f32.mrf.mxu0
    %1518 = vdwg.mxu0
    %1519 = vmatpush.bf16.msra.mxu0 0
    %1520 = vmatpush.bf16.msra.mxu0 0
    %1521 = vmatpush.bf16.msra.mxu0 0
    %1522 = vmatpush.bf16.msra.mxu0 0
    %1523 = vmatpush.bf16.msra.mxu0 0
    %1524 = vmatpush.bf16.msra.mxu0 %v1462
    %1525 = vmatpush.bf16.msra.mxu0 %v1426
    %1526 = vmatpush.bf16.msra.mxu0 %v1420
    %1527 = vmatmul.bf16.gmra.mxu0 %v1447
    %v1528 = vpop.f32.mrf.mxu0
    %v1529 = vadd.f32 %v1358, %v1528
    %v1530 = vpop.f32.mrf.mxu0
    %1531 = vdwg.mxu0
    %1532 = vmatpush.bf16.msra.mxu0 0
    %1533 = vmatpush.bf16.msra.mxu0 0
    %1534 = vmatpush.bf16.msra.mxu0 0
    %1535 = vmatpush.bf16.msra.mxu0 0
    %1536 = vmatpush.bf16.msra.mxu0 0
    %1537 = vmatpush.bf16.msra.mxu0 %v1465
    %1538 = vmatpush.bf16.msra.mxu0 %v1427
    %1539 = vmatpush.bf16.msra.mxu0 %v1421
    %1540 = vmatmul.bf16.gmra.mxu0 %v1447
    %v1541 = vpop.f32.mrf.mxu0
    %v1542 = vadd.f32 %v1358, %v1541
    %v1543 = vpop.f32.mrf.mxu0
    %1544 = vdwg.mxu0
    %v1545 = vld [vmem:[#allocation6] sm:$0xff]
    %v1546 = vld [vmem:[#allocation6 + $0x8] sm:$0xff]
    %v1547 = vld [vmem:[#allocation6 + $0x10] sm:$0xff]
    %1551 = vst [vmem:[#allocation1] ss:$2 sm:$0xff] %v1545
    %s1552 = scalar_lea.vmem [#allocation1], 16
    %1553 = vst [vmem:[%s1552] ss:$2 sm:$0xff] %v1546
    %s1554 = scalar_lea.vmem [#allocation1], 32
    %1555 = vst [vmem:[%s1554] ss:$2 sm:$0xff] %v1547
    %v1556 = vld.sshfl [vmem:[#allocation1] sm:$0xff pattern:$0x75316420]
    %v1557 = vld.sshfl [vmem:[#allocation1 + $0x8] sm:$0xff pattern:$0x75316420]
    %v1558 = vld.sshfl [vmem:[#allocation1 + $0x10] sm:$0xff pattern:$0x75316420]
    %v1559 = vld.sshfl [vmem:[#allocation1 + $0x18] sm:$0xff pattern:$0x75316420]
    %v1560 = vld.sshfl [vmem:[#allocation1 + $0x20] sm:$0xff pattern:$0x75316420]
    %v1561 = vld.sshfl [vmem:[#allocation1 + $0x28] sm:$0xff pattern:$0x75316420]
    %v1568 = vadd.f32 %v1477, %v1556
    %v1569 = vadd.f32 %v1490, %v1557
    %v1570 = vadd.f32 %v1503, %v1558
    %v1571 = vadd.f32 %v1516, %v1559
    %v1572 = vadd.f32 %v1529, %v1560
    %v1573 = vadd.f32 %v1542, %v1561
    %v1574 = vmax.f32 %v1568, 0.0
    %v1575 = vmax.f32 %v1569, 0.0
    %v1576 = vmax.f32 %v1570, 0.0
    %v1577 = vmax.f32 %v1571, 0.0
    %v1578 = vmax.f32 %v1572, 0.0
    %v1579 = vmax.f32 %v1573, 0.0
    %v1586 = vrot.slane %v1575, 4
    %v1587 = vrot.slane %v1577, 4
    %v1588 = vrot.slane %v1579, 4
    %v1589 = vsel %vm524, %v1574, %v1586
    %v1590 = vsel %vm524, %v1576, %v1587
    %v1591 = vsel %vm524, %v1578, %v1588
    %1595 = vst [vmem:[#allocation11] sm:$0xff] %v1589
    %1596 = vst [vmem:[#allocation11 + $0x8] sm:$0xff] %v1590
    %1597 = vst [vmem:[#allocation11 + $0x10] sm:$0xff] %v1591
    // Predicated region
    $region46: #{tpu_custom_call.1} parent=1 // pred_check
      _
    $region47: #{tpu_custom_call.1} parent=1 // pred_check_branch
      %1599 = sbr.rel (0) target = $region49
    $region48: #{tpu_custom_call.1} parent=1 // pred_region
      %1601 = vsyncadd [#allocation5], 0
      %s1603 = sshll.u32 [#allocation11], 4
      %s1604 = int_to_ptr.vmem [resolvable:$true] %s1603
      %s1605 = sshll.u32 %s7, 4
      %s1606 = int_to_ptr.hbm [resolvable:$true] %s1605
      %1608 = dma.vmem_to_hbm [thread:$0]  %s1604, 384, %s1606, [#allocation5]
    $region49: #{tpu_custom_call.1} parent=1 // pred_fallthru
      _
    // Predicated region
    $region50: #{tpu_custom_call.1} parent=1 // pred_check
      _
    $region51: #{tpu_custom_call.1} parent=1 // pred_check_branch
      %1610 = sbr.rel (0) target = $region53
    $region52: #{tpu_custom_call.1} parent=1 // pred_region
      %1612 = dma.done [#allocation5], 384
    $region53: #{tpu_custom_call.1} parent=1 // pred_fallthru
      _
    %1613 = vsyncpa [#allocation4], 1
    %1614 = vsyncpa [#allocation7], 1
    %1615 = vsyncpa [#allocation10], 1
    %1616 = vsyncpa [#allocation5], 1

</llo_original>
